<compile_context>
chip_gen: v6e
topology: v6e:2x2x1
jax: 0.10.0
libtpu: 0.0.40
codegen_flags: <defaults>
</compile_context>

<pallas_src>
import functools
import math

import jax
import jax.numpy as jnp
from jax.experimental import pallas as pl
from jax.experimental.pallas import tpu as pltpu

LN_EPS = 1e-5          # nn.LayerNorm default
MASK_FILL = -60000.0   # matches the reference attention()


# --------------------------------------------------------------------------
# helpers
# --------------------------------------------------------------------------
def _round_up(x, m):
    return (x + m - 1) // m * m


def _pick_row_tile(n_rows, target=256):
    # Row tile: multiple of 8 (f32 sublane); target 256 so large N gets many
    # grid steps (double buffering / megacore), clamped so toy shapes are not
    # over-padded.
    return min(target, _round_up(n_rows, 8))


def _compiler_params(dim_sems, vmem_bytes=None):
    kwargs = dict(dimension_semantics=dim_sems)
    if vmem_bytes is not None:
        # Explicit scoped-VMEM budget from the actual tile sizes (+50% slack),
        # capped at 64 MiB so it is legal on v7x and never below 16 MiB.
        kwargs["vmem_limit_bytes"] = int(
            min(64 * 2**20, max(vmem_bytes + vmem_bytes // 2, 16 * 2**20)))
    return pltpu.CompilerParams(**kwargs)


# --------------------------------------------------------------------------
# LayerNorm kernel
# --------------------------------------------------------------------------
def _layernorm_kernel(x_ref, g_ref, b_ref, o_ref):
    x = x_ref[...].astype(jnp.float32)
    mu = jnp.mean(x, axis=-1, keepdims=True)
    xc = x - mu
    var = jnp.mean(xc * xc, axis=-1, keepdims=True)
    inv = jax.lax.rsqrt(var + LN_EPS)
    o_ref[...] = (xc * inv * g_ref[...] + b_ref[...]).astype(o_ref.dtype)


def layernorm(x, gamma, beta, *, block_rows=None):
    orig_shape = x.shape
    d = orig_shape[-1]
    x2d = x.reshape(-1, d)
    n = x2d.shape[0]
    tm = block_rows or _pick_row_tile(n)
    n_p = _round_up(n, tm)
    if n_p != n:
        x2d = jnp.pad(x2d, ((0, n_p - n), (0, 0)))

    out = pl.pallas_call(
        _layernorm_kernel,
        out_shape=jax.ShapeDtypeStruct((n_p, d), x.dtype),
        grid_spec=pltpu.PrefetchScalarGridSpec(
            num_scalar_prefetch=0,
            grid=(n_p // tm,),
            in_specs=[
                pl.BlockSpec((tm, d), lambda i: (i, 0)),
                pl.BlockSpec((1, d), lambda i: (0, 0)),
                pl.BlockSpec((1, d), lambda i: (0, 0)),
            ],
            out_specs=pl.BlockSpec((tm, d), lambda i: (i, 0)),
        ),
        compiler_params=_compiler_params(("parallel",)),
    )(x2d,
      gamma.reshape(1, d).astype(jnp.float32),
      beta.reshape(1, d).astype(jnp.float32))
    return out[:n].reshape(orig_shape)


# --------------------------------------------------------------------------
# Linear (x @ W + b) kernel — used for the 4 MHA projections
# --------------------------------------------------------------------------
def _linear_kernel(x_ref, w_ref, b_ref, o_ref):
    x = x_ref[...].astype(jnp.bfloat16)      # bf16 operands -> fast MXU path
    y = jnp.dot(x, w_ref[...], preferred_element_type=jnp.float32)
    o_ref[...] = (y + b_ref[...]).astype(o_ref.dtype)


def linear(x, w, b, *, block_rows=None):
    """y = x @ w + b with w: [d_in, d_out] (pre-transposed vs. nn.Linear)."""
    orig_shape = x.shape
    d_in, d_out = w.shape
    x2d = x.reshape(-1, d_in)
    n = x2d.shape[0]

    tm = block_rows or _pick_row_tile(n)
    n_p = _round_up(n, tm)
    d_in_p = _round_up(d_in, 128)    # lane-dense contraction dim
    d_out_p = _round_up(d_out, 128)  # lane-dense output -> unmasked stores

    x2d = jnp.pad(x2d, ((0, n_p - n), (0, d_in_p - d_in)))
    w_p = jnp.pad(w, ((0, d_in_p - d_in), (0, d_out_p - d_out))).astype(jnp.bfloat16)
    b_p = jnp.pad(b, (0, d_out_p - d_out)).reshape(1, d_out_p).astype(jnp.float32)

    vmem = 2 * (tm * d_in_p * 4 + tm * d_out_p * 4
                + d_in_p * d_out_p * 2 + d_out_p * 4)
    cost = pl.CostEstimate(
        flops=2 * n_p * d_in_p * d_out_p,
        transcendentals=0,
        bytes_accessed=(n_p * d_in_p * 4 + d_in_p * d_out_p * 2
                        + d_out_p * 4 + n_p * d_out_p * 4))

    out = pl.pallas_call(
        _linear_kernel,
        out_shape=jax.ShapeDtypeStruct((n_p, d_out_p), x.dtype),
        grid_spec=pltpu.PrefetchScalarGridSpec(
            num_scalar_prefetch=0,
            grid=(n_p // tm,),
            in_specs=[
                pl.BlockSpec((tm, d_in_p), lambda i: (i, 0)),
                pl.BlockSpec((d_in_p, d_out_p), lambda i: (0, 0)),  # resident W
                pl.BlockSpec((1, d_out_p), lambda i: (0, 0)),
            ],
            out_specs=pl.BlockSpec((tm, d_out_p), lambda i: (i, 0)),
        ),
        compiler_params=_compiler_params(("parallel",), vmem),
        cost_estimate=cost,
    )(x2d, w_p, b_p)
    return out[:n, :d_out].reshape(*orig_shape[:-1], d_out)


# --------------------------------------------------------------------------
# PositionwiseFeedForward kernel: rows "parallel", d_ff reduction "arbitrary"
# --------------------------------------------------------------------------
def _ffn_kernel(x_ref, w1_ref, b1_ref, w2_ref, b2_ref, o_ref, acc_ref):
    kf = pl.program_id(1)

    @pl.when(kf == 0)
    def _():
        acc_ref[...] = jnp.zeros_like(acc_ref)

    x = x_ref[...].astype(jnp.bfloat16)
    h = jnp.dot(x, w1_ref[...], preferred_element_type=jnp.float32)
    h = jnp.maximum(h + b1_ref[...], 0.0)                    # ReLU (dropout=id)
    acc_ref[...] += jnp.dot(h.astype(jnp.bfloat16), w2_ref[...],
                            preferred_element_type=jnp.float32)

    @pl.when(kf == pl.num_programs(1) - 1)
    def _():
        o_ref[...] = (acc_ref[...] + b2_ref[...]).astype(o_ref.dtype)


def positionwise_feed_forward(x, w1, b1, w2, b2, *, block_rows=None, block_ff=None):
    """w1: [d_model, d_ff], b1: [d_ff], w2: [d_ff, d_model], b2: [d_model]."""
    orig_shape = x.shape
    d_model = orig_shape[-1]
    d_ff = w1.shape[1]
    x2d = x.reshape(-1, d_model)
    n = x2d.shape[0]

    tm = block_rows or _pick_row_tile(n)
    dmp = _round_up(d_model, 128)
    tf = _round_up(block_ff or min(1024, _round_up(d_ff, 128)), 128)
    dffp = _round_up(d_ff, tf)
    n_p = _round_up(n, tm)

    x2d = jnp.pad(x2d, ((0, n_p - n), (0, dmp - d_model)))
    w1_p = jnp.pad(w1, ((0, dmp - d_model), (0, dffp - d_ff))).astype(jnp.bfloat16)
    b1_p = jnp.pad(b1, (0, dffp - d_ff)).reshape(1, dffp).astype(jnp.float32)
    w2_p = jnp.pad(w2, ((0, dffp - d_ff), (0, dmp - d_model))).astype(jnp.bfloat16)
    b2_p = jnp.pad(b2, (0, dmp - d_model)).reshape(1, dmp).astype(jnp.float32)

    vmem = (2 * (tm * dmp * 4 + tm * dmp * 4          # x tile + out tile
                 + dmp * tf * 2 + tf * dmp * 2        # w1 / w2 chunks (bf16)
                 + tf * 4 + dmp * 4)                  # biases
            + tm * dmp * 4)                           # f32 accumulator
    cost = pl.CostEstimate(
        flops=4 * n_p * dmp * dffp,
        transcendentals=0,
        bytes_accessed=(2 * n_p * dmp * 4 + 2 * dmp * dffp * 2
                        + dffp * 4 + dmp * 4))

    out = pl.pallas_call(
        _ffn_kernel,
        out_shape=jax.ShapeDtypeStruct((n_p, dmp), x.dtype),
        grid_spec=pltpu.PrefetchScalarGridSpec(
            num_scalar_prefetch=0,
            grid=(n_p // tm, dffp // tf),   # reduction axis (d_ff chunks) last
            in_specs=[
                pl.BlockSpec((tm, dmp), lambda i, kf: (i, 0)),   # x tile
                pl.BlockSpec((dmp, tf), lambda i, kf: (0, kf)),  # w1 chunk
                pl.BlockSpec((1, tf), lambda i, kf: (0, kf)),    # b1 chunk
                pl.BlockSpec((tf, dmp), lambda i, kf: (kf, 0)),  # w2 chunk
                pl.BlockSpec((1, dmp), lambda i, kf: (0, 0)),    # b2
            ],
            out_specs=pl.BlockSpec((tm, dmp), lambda i, kf: (i, 0)),
            scratch_shapes=[pltpu.VMEM((tm, dmp), jnp.float32)],
        ),
        compiler_params=_compiler_params(("parallel", "arbitrary"), vmem),
        cost_estimate=cost,
    )(x2d, w1_p, b1_p, w2_p, b2_p)
    return out[:n, :d_model].reshape(orig_shape)


# --------------------------------------------------------------------------
# Scaled-dot-product attention kernel (one grid step per (batch, head))
# --------------------------------------------------------------------------
def _attention_kernel(q_ref, k_ref, v_ref, m_ref, o_ref, a_ref, *, scale):
    q = q_ref[...].astype(jnp.float32)    # (S, Dk)
    k = k_ref[...].astype(jnp.float32)
    v = v_ref[...].astype(jnp.float32)
    s = jax.lax.dot_general(q, k, (((1,), (1,)), ((), ())),
                            preferred_element_type=jnp.float32) * scale
    s = jnp.where(m_ref[...] == 0.0, MASK_FILL, s)
    s = s - jnp.max(s, axis=-1, keepdims=True)
    p = jnp.exp(s)
    p = p / jnp.sum(p, axis=-1, keepdims=True)
    o_ref[...] = jnp.dot(p, v, preferred_element_type=jnp.float32).astype(o_ref.dtype)
    a_ref[...] = p.astype(a_ref.dtype)


def scaled_dot_attention(q, k, v, mask):
    """q,k,v: (B, H, S, Dk); mask: (B, S, S) of {0,1}. Returns (ctx, attn)."""
    B, H, S, Dk = q.shape
    kernel = functools.partial(_attention_kernel, scale=1.0 / math.sqrt(Dk))
    # TODO(synk): for long sequences this should become a flash-style kernel
    # with KV tiling; full-sequence blocks are fine for the small demo shapes.
    out, attn = pl.pallas_call(
        kernel,
        out_shape=(jax.ShapeDtypeStruct((B, H, S, Dk), q.dtype),
                   jax.ShapeDtypeStruct((B, H, S, S), jnp.float32)),
        grid_spec=pltpu.PrefetchScalarGridSpec(
            num_scalar_prefetch=0,
            grid=(B, H),
            in_specs=[
                pl.BlockSpec((None, None, S, Dk), lambda b, h: (b, h, 0, 0)),
                pl.BlockSpec((None, None, S, Dk), lambda b, h: (b, h, 0, 0)),
                pl.BlockSpec((None, None, S, Dk), lambda b, h: (b, h, 0, 0)),
                pl.BlockSpec((None, S, S), lambda b, h: (b, 0, 0)),
            ],
            out_specs=[
                pl.BlockSpec((None, None, S, Dk), lambda b, h: (b, h, 0, 0)),
                pl.BlockSpec((None, None, S, S), lambda b, h: (b, h, 0, 0)),
            ],
        ),
        compiler_params=_compiler_params(("parallel", "parallel")),
    )(q, k, v, mask.astype(jnp.float32))
    return out, attn


# --------------------------------------------------------------------------
# Module composition (dropout == identity in eval mode)
# --------------------------------------------------------------------------
def multi_head_attention(x, mask, p, n_head):
    B, S, D = x.shape
    d_k = D // n_head
    q = linear(x, p["wq"], p["bq"])
    k = linear(x, p["wk"], p["bk"])
    v = linear(x, p["wv"], p["bv"])

    def split_heads(t):
        return t.reshape(B, S, n_head, d_k).transpose(0, 2, 1, 3)

    ctx, attn = scaled_dot_attention(split_heads(q), split_heads(k),
                                     split_heads(v), mask)
    ctx = ctx.transpose(0, 2, 1, 3).reshape(B, S, D)
    return linear(ctx, p["wo"], p["bo"]), attn


def encoder_block(x, mask, p, n_head):
    # SelfAttentionBlock
    x_ = layernorm(x, p["sa_norm_g"], p["sa_norm_b"])
    x_, attn = multi_head_attention(x_, mask, p["mha"], n_head)
    x = x_ + x
    # FeedForwardBlock
    x_ = layernorm(x, p["ff_norm_g"], p["ff_norm_b"])
    x_ = positionwise_feed_forward(x_, p["ffn"]["w1"], p["ffn"]["b1"],
                                   p["ffn"]["w2"], p["ffn"]["b2"])
    x = x_ + x
    return x, attn


@functools.partial(jax.jit, static_argnames=("n_head",))
def encoder_forward(x, mask, params, *, n_head):
    outputs, attns = [], []
    for layer_p, norm_p in zip(params["layers"], params["norms"]):
        x, attn = encoder_block(x, mask, layer_p, n_head)
        outputs.append(layernorm(x, norm_p["g"], norm_p["b"]))
        attns.append(attn)
    return outputs, attns


# --------------------------------------------------------------------------
# Parameter init (nn.Linear-style uniform, weights stored as [in, out])
# --------------------------------------------------------------------------
def init_encoder_params(key, n_layers, d_model, d_ff, dtype=jnp.float32):
    def linear_init(k, d_in, d_out):
        lim = 1.0 / math.sqrt(d_in)
        kw, kb = jax.random.split(k)
        w = jax.random.uniform(kw, (d_in, d_out), dtype, -lim, lim)
        b = jax.random.uniform(kb, (d_out,), dtype, -lim, lim)
        return w, b

    layers, norms = [], []
    for lk in jax.random.split(key, n_layers):
        ks = jax.random.split(lk, 6)
        wq, bq = linear_init(ks[0], d_model, d_model)
        wk, bk = linear_init(ks[1], d_model, d_model)
        wv, bv = linear_init(ks[2], d_model, d_model)
        wo, bo = linear_init(ks[3], d_model, d_model)
        w1, b1 = linear_init(ks[4], d_model, d_ff)
        w2, b2 = linear_init(ks[5], d_ff, d_model)
        layers.append({
            "sa_norm_g": jnp.ones((d_model,), dtype),
            "sa_norm_b": jnp.zeros((d_model,), dtype),
            "mha": {"wq": wq, "bq": bq, "wk": wk, "bk": bk,
                    "wv": wv, "bv": bv, "wo": wo, "bo": bo},
            "ff_norm_g": jnp.ones((d_model,), dtype),
            "ff_norm_b": jnp.zeros((d_model,), dtype),
            "ffn": {"w1": w1, "b1": b1, "w2": w2, "b2": b2},
        })
        norms.append({"g": jnp.ones((d_model,), dtype),
                      "b": jnp.zeros((d_model,), dtype)})
    return {"layers": layers, "norms": norms}


# --------------------------------------------------------------------------
# Pure-JAX f32 reference (mirrors the PyTorch module, eval mode)
# --------------------------------------------------------------------------
def _ref_layernorm(x, g, b):
    mu = jnp.mean(x, axis=-1, keepdims=True)
    var = jnp.mean((x - mu) ** 2, axis=-1, keepdims=True)
    return (x - mu) / jnp.sqrt(var + LN_EPS) * g + b


def _ref_mha(x, mask, p, n_head):
    B, S, D = x.shape
    d_k = D // n_head

    def proj(w, b):
        return (x @ w + b).reshape(B, S, n_head, d_k).transpose(0, 2, 1, 3)

    q, k, v = proj(p["wq"], p["bq"]), proj(p["wk"], p["bk"]), proj(p["wv"], p["bv"])
    s = jnp.einsum("bhqd,bhkd->bhqk", q, k) / math.sqrt(d_k)
    s = jnp.where(mask[:, None, :, :] == 0, MASK_FILL, s)
    a = jax.nn.softmax(s, axis=-1)
    ctx = jnp.einsum("bhqk,bhkd->bhqd", a, v).transpose(0, 2, 1, 3).reshape(B, S, D)
    return ctx @ p["wo"] + p["bo"], a


def _ref_encoder(x, mask, params, n_head):
    outputs, attns = [], []
    for lp, np_ in zip(params["layers"], params["norms"]):
        x_ = _ref_layernorm(x, lp["sa_norm_g"], lp["sa_norm_b"])
        x_, attn = _ref_mha(x_, mask, lp["mha"], n_head)
        x = x_ + x
        x_ = _ref_layernorm(x, lp["ff_norm_g"], lp["ff_norm_b"])
        f = lp["ffn"]
        x_ = jnp.maximum(x_ @ f["w1"] + f["b1"], 0.0) @ f["w2"] + f["b2"]
        x = x_ + x
        outputs.append(_ref_layernorm(x, np_["g"], np_["b"]))
        attns.append(attn)
    return outputs, attns


if __name__ == "__main__":
    batch, seq, d_model, d_ff, n_head, n_layers = 2, 8, 32, 64, 4, 2

    key = jax.random.PRNGKey(0)
    kx, kp = jax.random.split(key)
    x = jax.random.normal(kx, (batch, seq, d_model), dtype=jnp.float32)
    # Padding-style mask: second batch element masks its last two key positions.
    mask = jnp.ones((batch, seq, seq), dtype=jnp.float32)
    mask = mask.at[1, :, seq - 2:].set(0.0)

    params = init_encoder_params(kp, n_layers, d_model, d_ff)

    outputs, attns = encoder_forward(x, mask, params, n_head=n_head)
    (outputs, attns) = jax.block_until_ready((outputs, attns))

    ref_outputs, ref_attns = _ref_encoder(x, mask, params, n_head)

    # Kernels feed the MXU bf16 operands (f32 accumulation), so tolerance vs.
    # the f32 reference is loosened accordingly (per review guidance).
    for o, r in zip(outputs, ref_outputs):
        assert o.shape == r.shape
        assert jnp.allclose(o, r, atol=5e-2, rtol=5e-2), float(jnp.max(jnp.abs(o - r)))
    for a, r in zip(attns, ref_attns):
        assert a.shape == r.shape
        assert jnp.allclose(a, r, atol=5e-2, rtol=5e-2), float(jnp.max(jnp.abs(a - r)))

    print("KERNEL_OK")
</pallas_src>

<mosaic_0001>
module attributes {stable_mosaic.version = 11 : i64} {
  func.func @_layernorm_kernel(%arg0: i32, %arg1: memref<16x32xf32, #tpu.memory_space<vmem>>, %arg2: memref<1x32xf32, #tpu.memory_space<vmem>>, %arg3: memref<1x32xf32, #tpu.memory_space<vmem>>, %arg4: memref<16x32xf32, #tpu.memory_space<vmem>>) attributes {dimension_semantics = [#tpu.dimension_semantics<parallel>], iteration_bounds = array<i64: 1>, scalar_prefetch = 0 : i64, scratch_operands = 0 : i64, tpu.core_type = #tpu.core_type<tc>, window_params = [{transform_indices = @transform_0, window_bounds = array<i64: 16, 32>}, {pipeline_mode = #tpu.pipeline_mode<synchronous>, transform_indices = @transform_1, window_bounds = array<i64: 1, 32>}, {pipeline_mode = #tpu.pipeline_mode<synchronous>, transform_indices = @transform_2, window_bounds = array<i64: 1, 32>}, {transform_indices = @transform_3, window_bounds = array<i64: 16, 32>}]} {
    %c0 = arith.constant 0 : index
    %c0_0 = arith.constant 0 : index
    %0 = vector.load %arg1[%c0, %c0_0] : memref<16x32xf32, #tpu.memory_space<vmem>>, vector<16x32xf32>
    %cst = arith.constant dense<0.000000e+00> : vector<16xf32>
    %1 = vector.multi_reduction <add>, %0, %cst [1] : vector<16x32xf32> to vector<16xf32>
    %2 = vector.shape_cast %1 : vector<16xf32> to vector<16x1xf32>
    %cst_1 = arith.constant 3.200000e+01 : f32
    %3 = vector.broadcast %cst_1 : f32 to vector<16x1xf32>
    %4 = arith.divf %2, %3 : vector<16x1xf32>
    %5 = vector.broadcast %4 : vector<16x1xf32> to vector<16x32xf32>
    %6 = arith.subf %0, %5 : vector<16x32xf32>
    %7 = arith.mulf %6, %6 : vector<16x32xf32>
    %cst_2 = arith.constant dense<0.000000e+00> : vector<16xf32>
    %8 = vector.multi_reduction <add>, %7, %cst_2 [1] : vector<16x32xf32> to vector<16xf32>
    %9 = vector.shape_cast %8 : vector<16xf32> to vector<16x1xf32>
    %cst_3 = arith.constant 3.200000e+01 : f32
    %10 = vector.broadcast %cst_3 : f32 to vector<16x1xf32>
    %11 = arith.divf %9, %10 : vector<16x1xf32>
    %cst_4 = arith.constant 9.99999974E-6 : f32
    %12 = vector.broadcast %cst_4 : f32 to vector<16x1xf32>
    %13 = arith.addf %11, %12 : vector<16x1xf32>
    %14 = math.rsqrt %13 : vector<16x1xf32>
    %15 = vector.broadcast %14 : vector<16x1xf32> to vector<16x32xf32>
    %16 = arith.mulf %6, %15 : vector<16x32xf32>
    %c0_5 = arith.constant 0 : index
    %c0_6 = arith.constant 0 : index
    %17 = vector.load %arg2[%c0_5, %c0_6] : memref<1x32xf32, #tpu.memory_space<vmem>>, vector<1x32xf32>
    %18 = vector.broadcast %17 : vector<1x32xf32> to vector<16x32xf32>
    %19 = arith.mulf %16, %18 : vector<16x32xf32>
    %c0_7 = arith.constant 0 : index
    %c0_8 = arith.constant 0 : index
    %20 = vector.load %arg3[%c0_7, %c0_8] : memref<1x32xf32, #tpu.memory_space<vmem>>, vector<1x32xf32>
    %21 = vector.broadcast %20 : vector<1x32xf32> to vector<16x32xf32>
    %22 = arith.addf %19, %21 : vector<16x32xf32>
    %c0_9 = arith.constant 0 : index
    %c0_10 = arith.constant 0 : index
    %23 = vector.load %arg4[%c0_9, %c0_10] : memref<16x32xf32, #tpu.memory_space<vmem>>, vector<16x32xf32>
    tpu.vector_store %arg4[%c0_9, %c0_10], %22 {strides = array<i32>} : memref<16x32xf32, #tpu.memory_space<vmem>>, vector<16x32xf32>,
    return
  }
  func.func @transform_0(%arg0: i32) -> (i32, i32) {
    %c0_i32 = arith.constant 0 : i32
    %c0_i32_0 = arith.constant 0 : i32
    return %arg0, %c0_i32 : i32, i32
  }
  func.func @transform_1(%arg0: i32) -> (i32, i32) {
    %c0_i32 = arith.constant 0 : i32
    %c0_i32_0 = arith.constant 0 : i32
    %c0_i32_1 = arith.constant 0 : i32
    return %c0_i32, %c0_i32_0 : i32, i32
  }
  func.func @transform_2(%arg0: i32) -> (i32, i32) {
    %c0_i32 = arith.constant 0 : i32
    %c0_i32_0 = arith.constant 0 : i32
    %c0_i32_1 = arith.constant 0 : i32
    return %c0_i32, %c0_i32_0 : i32, i32
  }
  func.func @transform_3(%arg0: i32) -> (i32, i32) {
    %c0_i32 = arith.constant 0 : i32
    %c0_i32_0 = arith.constant 0 : i32
    return %arg0, %c0_i32 : i32, i32
  }
}

module attributes {stable_mosaic.version = 11 : i64} {
  func.func @_linear_kernel(%arg0: i32, %arg1: memref<16x128xf32, #tpu.memory_space<vmem>>, %arg2: memref<128x128xbf16, #tpu.memory_space<vmem>>, %arg3: memref<1x128xf32, #tpu.memory_space<vmem>>, %arg4: memref<16x128xf32, #tpu.memory_space<vmem>>) attributes {dimension_semantics = [#tpu.dimension_semantics<parallel>], iteration_bounds = array<i64: 1>, scalar_prefetch = 0 : i64, scratch_operands = 0 : i64, tpu.core_type = #tpu.core_type<tc>, window_params = [{transform_indices = @transform_0, window_bounds = array<i64: 16, 128>}, {pipeline_mode = #tpu.pipeline_mode<synchronous>, transform_indices = @transform_1, window_bounds = array<i64: 128, 128>}, {pipeline_mode = #tpu.pipeline_mode<synchronous>, transform_indices = @transform_2, window_bounds = array<i64: 1, 128>}, {transform_indices = @transform_3, window_bounds = array<i64: 16, 128>}]} {
    %c0 = arith.constant 0 : index
    %c0_0 = arith.constant 0 : index
    %0 = vector.load %arg1[%c0, %c0_0] : memref<16x128xf32, #tpu.memory_space<vmem>>, vector<16x128xf32>
    %1 = arith.truncf %0 : vector<16x128xf32> to vector<16x128xbf16>
    %c0_1 = arith.constant 0 : index
    %c0_2 = arith.constant 0 : index
    %2 = vector.load %arg2[%c0_1, %c0_2] : memref<128x128xbf16, #tpu.memory_space<vmem>>, vector<128x128xbf16>
    %cst = arith.constant dense<0.000000e+00> : vector<16x128xf32>
    %3 = tpu.matmul %1, %2, %cst {dimension_numbers = #tpu.dot_dimension_numbers<[1], [0], [0], [1], [0, 0, 1, 1], [], []>} : vector<16x128xbf16>, vector<128x128xbf16>, vector<16x128xf32> -> vector<16x128xf32>
    %c0_3 = arith.constant 0 : index
    %c0_4 = arith.constant 0 : index
    %4 = vector.load %arg3[%c0_3, %c0_4] : memref<1x128xf32, #tpu.memory_space<vmem>>, vector<1x128xf32>
    %5 = vector.broadcast %4 : vector<1x128xf32> to vector<16x128xf32>
    %6 = arith.addf %3, %5 : vector<16x128xf32>
    %c0_5 = arith.constant 0 : index
    %c0_6 = arith.constant 0 : index
    %7 = vector.load %arg4[%c0_5, %c0_6] : memref<16x128xf32, #tpu.memory_space<vmem>>, vector<16x128xf32>
    tpu.vector_store %arg4[%c0_5, %c0_6], %6 {strides = array<i32>} : memref<16x128xf32, #tpu.memory_space<vmem>>, vector<16x128xf32>,
    return
  }
  func.func @transform_0(%arg0: i32) -> (i32, i32) {
    %c0_i32 = arith.constant 0 : i32
    %c0_i32_0 = arith.constant 0 : i32
    return %arg0, %c0_i32 : i32, i32
  }
  func.func @transform_1(%arg0: i32) -> (i32, i32) {
    %c0_i32 = arith.constant 0 : i32
    %c0_i32_0 = arith.constant 0 : i32
    %c0_i32_1 = arith.constant 0 : i32
    return %c0_i32, %c0_i32_0 : i32, i32
  }
  func.func @transform_2(%arg0: i32) -> (i32, i32) {
    %c0_i32 = arith.constant 0 : i32
    %c0_i32_0 = arith.constant 0 : i32
    %c0_i32_1 = arith.constant 0 : i32
    return %c0_i32, %c0_i32_0 : i32, i32
  }
  func.func @transform_3(%arg0: i32) -> (i32, i32) {
    %c0_i32 = arith.constant 0 : i32
    %c0_i32_0 = arith.constant 0 : i32
    return %arg0, %c0_i32 : i32, i32
  }
}

module attributes {stable_mosaic.version = 11 : i64} {
  func.func @_attention_kernel(%arg0: i32, %arg1: i32, %arg2: memref<1x1x8x8xf32, #tpu.memory_space<vmem>>, %arg3: memref<1x1x8x8xf32, #tpu.memory_space<vmem>>, %arg4: memref<1x1x8x8xf32, #tpu.memory_space<vmem>>, %arg5: memref<1x8x8xf32, #tpu.memory_space<vmem>>, %arg6: memref<1x1x8x8xf32, #tpu.memory_space<vmem>>, %arg7: memref<1x1x8x8xf32, #tpu.memory_space<vmem>>) attributes {dimension_semantics = [#tpu.dimension_semantics<parallel>, #tpu.dimension_semantics<parallel>], iteration_bounds = array<i64: 2, 4>, scalar_prefetch = 0 : i64, scratch_operands = 0 : i64, tpu.core_type = #tpu.core_type<tc>, window_params = [{transform_indices = @transform_0, window_bounds = array<i64: 1, 1, 8, 8>}, {transform_indices = @transform_1, window_bounds = array<i64: 1, 1, 8, 8>}, {transform_indices = @transform_2, window_bounds = array<i64: 1, 1, 8, 8>}, {transform_indices = @transform_3, window_bounds = array<i64: 1, 8, 8>}, {transform_indices = @transform_4, window_bounds = array<i64: 1, 1, 8, 8>}, {transform_indices = @transform_5, window_bounds = array<i64: 1, 1, 8, 8>}]} {
    %c0 = arith.constant 0 : index
    %c0_0 = arith.constant 0 : index
    %c0_1 = arith.constant 0 : index
    %c0_2 = arith.constant 0 : index
    %0 = vector.load %arg2[%c0, %c0_0, %c0_1, %c0_2] : memref<1x1x8x8xf32, #tpu.memory_space<vmem>>, vector<1x1x8x8xf32>
    %1 = vector.shape_cast %0 : vector<1x1x8x8xf32> to vector<8x8xf32>
    %c0_3 = arith.constant 0 : index
    %c0_4 = arith.constant 0 : index
    %c0_5 = arith.constant 0 : index
    %c0_6 = arith.constant 0 : index
    %2 = vector.load %arg3[%c0_3, %c0_4, %c0_5, %c0_6] : memref<1x1x8x8xf32, #tpu.memory_space<vmem>>, vector<1x1x8x8xf32>
    %3 = vector.shape_cast %2 : vector<1x1x8x8xf32> to vector<8x8xf32>
    %c0_7 = arith.constant 0 : index
    %c0_8 = arith.constant 0 : index
    %c0_9 = arith.constant 0 : index
    %c0_10 = arith.constant 0 : index
    %4 = vector.load %arg4[%c0_7, %c0_8, %c0_9, %c0_10] : memref<1x1x8x8xf32, #tpu.memory_space<vmem>>, vector<1x1x8x8xf32>
    %5 = vector.shape_cast %4 : vector<1x1x8x8xf32> to vector<8x8xf32>
    %cst = arith.constant dense<0.000000e+00> : vector<8x8xf32>
    %6 = tpu.matmul %1, %3, %cst {dimension_numbers = #tpu.dot_dimension_numbers<[1], [1], [0], [0], [0, 0, 1, 0], [], []>} : vector<8x8xf32>, vector<8x8xf32>, vector<8x8xf32> -> vector<8x8xf32>
    %cst_11 = arith.constant 0.353553385 : f32
    %7 = vector.broadcast %cst_11 : f32 to vector<8x8xf32>
    %8 = arith.mulf %6, %7 : vector<8x8xf32>
    %c0_12 = arith.constant 0 : index
    %c0_13 = arith.constant 0 : index
    %c0_14 = arith.constant 0 : index
    %9 = vector.load %arg5[%c0_12, %c0_13, %c0_14] : memref<1x8x8xf32, #tpu.memory_space<vmem>>, vector<1x8x8xf32>
    %10 = vector.shape_cast %9 : vector<1x8x8xf32> to vector<8x8xf32>
    %cst_15 = arith.constant 0.000000e+00 : f32
    %11 = vector.broadcast %cst_15 : f32 to vector<8x8xf32>
    %12 = arith.cmpf oeq, %10, %11 : vector<8x8xf32>
    %cst_16 = arith.constant -6.000000e+04 : f32
    %13 = vector.broadcast %cst_16 : f32 to vector<8x8xf32>
    %14 = arith.select %12, %13, %8 : vector<8x8xi1>, vector<8x8xf32>
    %cst_17 = arith.constant dense<0xFF800000> : vector<8xf32>
    %15 = vector.multi_reduction <maximumf>, %14, %cst_17 [1] : vector<8x8xf32> to vector<8xf32>
    %16 = vector.shape_cast %15 : vector<8xf32> to vector<8x1xf32>
    %17 = vector.broadcast %16 : vector<8x1xf32> to vector<8x8xf32>
    %18 = arith.subf %14, %17 : vector<8x8xf32>
    %19 = math.exp %18 : vector<8x8xf32>
    %cst_18 = arith.constant dense<0.000000e+00> : vector<8xf32>
    %20 = vector.multi_reduction <add>, %19, %cst_18 [1] : vector<8x8xf32> to vector<8xf32>
    %21 = vector.shape_cast %20 : vector<8xf32> to vector<8x1xf32>
    %22 = vector.broadcast %21 : vector<8x1xf32> to vector<8x8xf32>
    %23 = arith.divf %19, %22 : vector<8x8xf32>
    %cst_19 = arith.constant dense<0.000000e+00> : vector<8x8xf32>
    %24 = tpu.matmul %23, %5, %cst_19 {dimension_numbers = #tpu.dot_dimension_numbers<[1], [0], [0], [1], [0, 0, 1, 1], [], []>} : vector<8x8xf32>, vector<8x8xf32>, vector<8x8xf32> -> vector<8x8xf32>
    %c0_20 = arith.constant 0 : index
    %c0_21 = arith.constant 0 : index
    %c0_22 = arith.constant 0 : index
    %c0_23 = arith.constant 0 : index
    %25 = vector.load %arg6[%c0_20, %c0_21, %c0_22, %c0_23] : memref<1x1x8x8xf32, #tpu.memory_space<vmem>>, vector<1x1x8x8xf32>
    %26 = vector.shape_cast %25 : vector<1x1x8x8xf32> to vector<8x8xf32>
    %27 = vector.shape_cast %24 : vector<8x8xf32> to vector<1x1x8x8xf32>
    tpu.vector_store %arg6[%c0_20, %c0_21, %c0_22, %c0_23], %27 {strides = array<i32>} : memref<1x1x8x8xf32, #tpu.memory_space<vmem>>, vector<1x1x8x8xf32>,
    %c0_24 = arith.constant 0 : index
    %c0_25 = arith.constant 0 : index
    %c0_26 = arith.constant 0 : index
    %c0_27 = arith.constant 0 : index
    %28 = vector.load %arg7[%c0_24, %c0_25, %c0_26, %c0_27] : memref<1x1x8x8xf32, #tpu.memory_space<vmem>>, vector<1x1x8x8xf32>
    %29 = vector.shape_cast %28 : vector<1x1x8x8xf32> to vector<8x8xf32>
    %30 = vector.shape_cast %23 : vector<8x8xf32> to vector<1x1x8x8xf32>
    tpu.vector_store %arg7[%c0_24, %c0_25, %c0_26, %c0_27], %30 {strides = array<i32>} : memref<1x1x8x8xf32, #tpu.memory_space<vmem>>, vector<1x1x8x8xf32>,
    return
  }
  func.func @transform_0(%arg0: i32, %arg1: i32) -> (i32, i32, i32, i32) {
    %c0_i32 = arith.constant 0 : i32
    %c0_i32_0 = arith.constant 0 : i32
    %c0_i32_1 = arith.constant 0 : i32
    return %arg0, %arg1, %c0_i32, %c0_i32_0 : i32, i32, i32, i32
  }
  func.func @transform_1(%arg0: i32, %arg1: i32) -> (i32, i32, i32, i32) {
    %c0_i32 = arith.constant 0 : i32
    %c0_i32_0 = arith.constant 0 : i32
    %c0_i32_1 = arith.constant 0 : i32
    return %arg0, %arg1, %c0_i32, %c0_i32_0 : i32, i32, i32, i32
  }
  func.func @transform_2(%arg0: i32, %arg1: i32) -> (i32, i32, i32, i32) {
    %c0_i32 = arith.constant 0 : i32
    %c0_i32_0 = arith.constant 0 : i32
    %c0_i32_1 = arith.constant 0 : i32
    return %arg0, %arg1, %c0_i32, %c0_i32_0 : i32, i32, i32, i32
  }
  func.func @transform_3(%arg0: i32, %arg1: i32) -> (i32, i32, i32) {
    %c0_i32 = arith.constant 0 : i32
    %c0_i32_0 = arith.constant 0 : i32
    %c0_i32_1 = arith.constant 0 : i32
    return %arg0, %c0_i32, %c0_i32_0 : i32, i32, i32
  }
  func.func @transform_4(%arg0: i32, %arg1: i32) -> (i32, i32, i32, i32) {
    %c0_i32 = arith.constant 0 : i32
    %c0_i32_0 = arith.constant 0 : i32
    %c0_i32_1 = arith.constant 0 : i32
    return %arg0, %arg1, %c0_i32, %c0_i32_0 : i32, i32, i32, i32
  }
  func.func @transform_5(%arg0: i32, %arg1: i32) -> (i32, i32, i32, i32) {
    %c0_i32 = arith.constant 0 : i32
    %c0_i32_0 = arith.constant 0 : i32
    %c0_i32_1 = arith.constant 0 : i32
    return %arg0, %arg1, %c0_i32, %c0_i32_0 : i32, i32, i32, i32
  }
}

module attributes {stable_mosaic.version = 11 : i64} {
  func.func @_ffn_kernel(%arg0: i32, %arg1: i32, %arg2: memref<16x128xf32, #tpu.memory_space<vmem>>, %arg3: memref<128x128xbf16, #tpu.memory_space<vmem>>, %arg4: memref<1x128xf32, #tpu.memory_space<vmem>>, %arg5: memref<128x128xbf16, #tpu.memory_space<vmem>>, %arg6: memref<1x128xf32, #tpu.memory_space<vmem>>, %arg7: memref<16x128xf32, #tpu.memory_space<vmem>>, %arg8: memref<16x128xf32, #tpu.memory_space<vmem>>) attributes {dimension_semantics = [#tpu.dimension_semantics<parallel>, #tpu.dimension_semantics<arbitrary>], iteration_bounds = array<i64: 1, 1>, scalar_prefetch = 0 : i64, scratch_operands = 1 : i64, tpu.core_type = #tpu.core_type<tc>, window_params = [{transform_indices = @transform_0, window_bounds = array<i64: 16, 128>}, {transform_indices = @transform_1, window_bounds = array<i64: 128, 128>}, {transform_indices = @transform_2, window_bounds = array<i64: 1, 128>}, {transform_indices = @transform_3, window_bounds = array<i64: 128, 128>}, {pipeline_mode = #tpu.pipeline_mode<synchronous>, transform_indices = @transform_4, window_bounds = array<i64: 1, 128>}, {transform_indices = @transform_5, window_bounds = array<i64: 16, 128>}]} {
    %c0_i32 = arith.constant 0 : i32
    %0 = arith.cmpi eq, %arg1, %c0_i32 : i32
    %1 = arith.extui %0 : i1 to i32
    %c0_i32_0 = arith.constant 0 : i32
    %2 = arith.cmpi ne, %1, %c0_i32_0 : i32
    scf.if %2 {
      %cst_16 = arith.constant 0.000000e+00 : f32
      %21 = vector.broadcast %cst_16 : f32 to vector<16x128xf32>
      %c0_17 = arith.constant 0 : index
      %c0_18 = arith.constant 0 : index
      %22 = vector.load %arg8[%c0_17, %c0_18] : memref<16x128xf32, #tpu.memory_space<vmem>>, vector<16x128xf32>
      tpu.vector_store %arg8[%c0_17, %c0_18], %21 {strides = array<i32>} : memref<16x128xf32, #tpu.memory_space<vmem>>, vector<16x128xf32>,
    } else {
    }
    %c0 = arith.constant 0 : index
    %c0_1 = arith.constant 0 : index
    %3 = vector.load %arg2[%c0, %c0_1] : memref<16x128xf32, #tpu.memory_space<vmem>>, vector<16x128xf32>
    %4 = arith.truncf %3 : vector<16x128xf32> to vector<16x128xbf16>
    %c0_2 = arith.constant 0 : index
    %c0_3 = arith.constant 0 : index
    %5 = vector.load %arg3[%c0_2, %c0_3] : memref<128x128xbf16, #tpu.memory_space<vmem>>, vector<128x128xbf16>
    %cst = arith.constant dense<0.000000e+00> : vector<16x128xf32>
    %6 = tpu.matmul %4, %5, %cst {dimension_numbers = #tpu.dot_dimension_numbers<[1], [0], [0], [1], [0, 0, 1, 1], [], []>} : vector<16x128xbf16>, vector<128x128xbf16>, vector<16x128xf32> -> vector<16x128xf32>
    %c0_4 = arith.constant 0 : index
    %c0_5 = arith.constant 0 : index
    %7 = vector.load %arg4[%c0_4, %c0_5] : memref<1x128xf32, #tpu.memory_space<vmem>>, vector<1x128xf32>
    %8 = vector.broadcast %7 : vector<1x128xf32> to vector<16x128xf32>
    %9 = arith.addf %6, %8 : vector<16x128xf32>
    %cst_6 = arith.constant 0.000000e+00 : f32
    %10 = vector.broadcast %cst_6 : f32 to vector<16x128xf32>
    %11 = arith.maximumf %9, %10 : vector<16x128xf32>
    %c0_7 = arith.constant 0 : index
    %c0_8 = arith.constant 0 : index
    %12 = vector.load %arg8[%c0_7, %c0_8] : memref<16x128xf32, #tpu.memory_space<vmem>>, vector<16x128xf32>
    %13 = arith.truncf %11 : vector<16x128xf32> to vector<16x128xbf16>
    %c0_9 = arith.constant 0 : index
    %c0_10 = arith.constant 0 : index
    %14 = vector.load %arg5[%c0_9, %c0_10] : memref<128x128xbf16, #tpu.memory_space<vmem>>, vector<128x128xbf16>
    %cst_11 = arith.constant dense<0.000000e+00> : vector<16x128xf32>
    %15 = tpu.matmul %13, %14, %cst_11 {dimension_numbers = #tpu.dot_dimension_numbers<[1], [0], [0], [1], [0, 0, 1, 1], [], []>} : vector<16x128xbf16>, vector<128x128xbf16>, vector<16x128xf32> -> vector<16x128xf32>
    %16 = arith.addf %12, %15 : vector<16x128xf32>
    %c0_12 = arith.constant 0 : index
    %c0_13 = arith.constant 0 : index
    %17 = vector.load %arg8[%c0_12, %c0_13] : memref<16x128xf32, #tpu.memory_space<vmem>>, vector<16x128xf32>
    tpu.vector_store %arg8[%c0_12, %c0_13], %16 {strides = array<i32>} : memref<16x128xf32, #tpu.memory_space<vmem>>, vector<16x128xf32>,
    %c0_i32_14 = arith.constant 0 : i32
    %18 = arith.cmpi eq, %arg1, %c0_i32_14 : i32
    %19 = arith.extui %18 : i1 to i32
    %c0_i32_15 = arith.constant 0 : i32
    %20 = arith.cmpi ne, %19, %c0_i32_15 : i32
    scf.if %20 {
      %c0_16 = arith.constant 0 : index
      %c0_17 = arith.constant 0 : index
      %21 = vector.load %arg8[%c0_16, %c0_17] : memref<16x128xf32, #tpu.memory_space<vmem>>, vector<16x128xf32>
      %c0_18 = arith.constant 0 : index
      %c0_19 = arith.constant 0 : index
      %22 = vector.load %arg6[%c0_18, %c0_19] : memref<1x128xf32, #tpu.memory_space<vmem>>, vector<1x128xf32>
      %23 = vector.broadcast %22 : vector<1x128xf32> to vector<16x128xf32>
      %24 = arith.addf %21, %23 : vector<16x128xf32>
      %c0_20 = arith.constant 0 : index
      %c0_21 = arith.constant 0 : index
      %25 = vector.load %arg7[%c0_20, %c0_21] : memref<16x128xf32, #tpu.memory_space<vmem>>, vector<16x128xf32>
      tpu.vector_store %arg7[%c0_20, %c0_21], %24 {strides = array<i32>} : memref<16x128xf32, #tpu.memory_space<vmem>>, vector<16x128xf32>,
    } else {
    }
    return
  }
  func.func @transform_0(%arg0: i32, %arg1: i32) -> (i32, i32) {
    %c0_i32 = arith.constant 0 : i32
    %c0_i32_0 = arith.constant 0 : i32
    return %arg0, %c0_i32 : i32, i32
  }
  func.func @transform_1(%arg0: i32, %arg1: i32) -> (i32, i32) {
    %c0_i32 = arith.constant 0 : i32
    %c0_i32_0 = arith.constant 0 : i32
    return %c0_i32, %arg1 : i32, i32
  }
  func.func @transform_2(%arg0: i32, %arg1: i32) -> (i32, i32) {
    %c0_i32 = arith.constant 0 : i32
    %c0_i32_0 = arith.constant 0 : i32
    return %c0_i32, %arg1 : i32, i32
  }
  func.func @transform_3(%arg0: i32, %arg1: i32) -> (i32, i32) {
    %c0_i32 = arith.constant 0 : i32
    %c0_i32_0 = arith.constant 0 : i32
    return %arg1, %c0_i32 : i32, i32
  }
  func.func @transform_4(%arg0: i32, %arg1: i32) -> (i32, i32) {
    %c0_i32 = arith.constant 0 : i32
    %c0_i32_0 = arith.constant 0 : i32
    %c0_i32_1 = arith.constant 0 : i32
    return %c0_i32, %c0_i32_0 : i32, i32
  }
  func.func @transform_5(%arg0: i32, %arg1: i32) -> (i32, i32) {
    %c0_i32 = arith.constant 0 : i32
    %c0_i32_0 = arith.constant 0 : i32
    return %arg0, %c0_i32 : i32, i32
  }
}

module attributes {stable_mosaic.version = 11 : i64} {
  func.func @_layernorm_kernel(%arg0: i32, %arg1: memref<16x32xf32, #tpu.memory_space<vmem>>, %arg2: memref<1x32xf32, #tpu.memory_space<vmem>>, %arg3: memref<1x32xf32, #tpu.memory_space<vmem>>, %arg4: memref<16x32xf32, #tpu.memory_space<vmem>>) attributes {dimension_semantics = [#tpu.dimension_semantics<parallel>], iteration_bounds = array<i64: 1>, scalar_prefetch = 0 : i64, scratch_operands = 0 : i64, tpu.core_type = #tpu.core_type<tc>, window_params = [{transform_indices = @transform_0, window_bounds = array<i64: 16, 32>}, {pipeline_mode = #tpu.pipeline_mode<synchronous>, transform_indices = @transform_1, window_bounds = array<i64: 1, 32>}, {pipeline_mode = #tpu.pipeline_mode<synchronous>, transform_indices = @transform_2, window_bounds = array<i64: 1, 32>}, {transform_indices = @transform_3, window_bounds = array<i64: 16, 32>}]} {
    %c0 = arith.constant 0 : index
    %c0_0 = arith.constant 0 : index
    %0 = vector.load %arg1[%c0, %c0_0] : memref<16x32xf32, #tpu.memory_space<vmem>>, vector<16x32xf32>
    %cst = arith.constant dense<0.000000e+00> : vector<16xf32>
    %1 = vector.multi_reduction <add>, %0, %cst [1] : vector<16x32xf32> to vector<16xf32>
    %2 = vector.shape_cast %1 : vector<16xf32> to vector<16x1xf32>
    %cst_1 = arith.constant 3.200000e+01 : f32
    %3 = vector.broadcast %cst_1 : f32 to vector<16x1xf32>
    %4 = arith.divf %2, %3 : vector<16x1xf32>
    %5 = vector.broadcast %4 : vector<16x1xf32> to vector<16x32xf32>
    %6 = arith.subf %0, %5 : vector<16x32xf32>
    %7 = arith.mulf %6, %6 : vector<16x32xf32>
    %cst_2 = arith.constant dense<0.000000e+00> : vector<16xf32>
    %8 = vector.multi_reduction <add>, %7, %cst_2 [1] : vector<16x32xf32> to vector<16xf32>
    %9 = vector.shape_cast %8 : vector<16xf32> to vector<16x1xf32>
    %cst_3 = arith.constant 3.200000e+01 : f32
    %10 = vector.broadcast %cst_3 : f32 to vector<16x1xf32>
    %11 = arith.divf %9, %10 : vector<16x1xf32>
    %cst_4 = arith.constant 9.99999974E-6 : f32
    %12 = vector.broadcast %cst_4 : f32 to vector<16x1xf32>
    %13 = arith.addf %11, %12 : vector<16x1xf32>
    %14 = math.rsqrt %13 : vector<16x1xf32>
    %15 = vector.broadcast %14 : vector<16x1xf32> to vector<16x32xf32>
    %16 = arith.mulf %6, %15 : vector<16x32xf32>
    %c0_5 = arith.constant 0 : index
    %c0_6 = arith.constant 0 : index
    %17 = vector.load %arg2[%c0_5, %c0_6] : memref<1x32xf32, #tpu.memory_space<vmem>>, vector<1x32xf32>
    %18 = vector.broadcast %17 : vector<1x32xf32> to vector<16x32xf32>
    %19 = arith.mulf %16, %18 : vector<16x32xf32>
    %c0_7 = arith.constant 0 : index
    %c0_8 = arith.constant 0 : index
    %20 = vector.load %arg3[%c0_7, %c0_8] : memref<1x32xf32, #tpu.memory_space<vmem>>, vector<1x32xf32>
    %21 = vector.broadcast %20 : vector<1x32xf32> to vector<16x32xf32>
    %22 = arith.addf %19, %21 : vector<16x32xf32>
    %c0_9 = arith.constant 0 : index
    %c0_10 = arith.constant 0 : index
    %23 = vector.load %arg4[%c0_9, %c0_10] : memref<16x32xf32, #tpu.memory_space<vmem>>, vector<16x32xf32>
    tpu.vector_store %arg4[%c0_9, %c0_10], %22 {strides = array<i32>} : memref<16x32xf32, #tpu.memory_space<vmem>>, vector<16x32xf32>,
    return
  }
  func.func @transform_0(%arg0: i32) -> (i32, i32) {
    %c0_i32 = arith.constant 0 : i32
    %c0_i32_0 = arith.constant 0 : i32
    return %arg0, %c0_i32 : i32, i32
  }
  func.func @transform_1(%arg0: i32) -> (i32, i32) {
    %c0_i32 = arith.constant 0 : i32
    %c0_i32_0 = arith.constant 0 : i32
    %c0_i32_1 = arith.constant 0 : i32
    return %c0_i32, %c0_i32_0 : i32, i32
  }
  func.func @transform_2(%arg0: i32) -> (i32, i32) {
    %c0_i32 = arith.constant 0 : i32
    %c0_i32_0 = arith.constant 0 : i32
    %c0_i32_1 = arith.constant 0 : i32
    return %c0_i32, %c0_i32_0 : i32, i32
  }
  func.func @transform_3(%arg0: i32) -> (i32, i32) {
    %c0_i32 = arith.constant 0 : i32
    %c0_i32_0 = arith.constant 0 : i32
    return %arg0, %c0_i32 : i32, i32
  }
}

</mosaic_0001>

<llo_original>
// kernel: encoder_forward.18
$region0: #{encoder_forward.18}
  #allocation0 [shape = 'u32[]', space=smem, size = 0x4, offset = 0x4, fixed_abs, tag = 'smem constant byte address 0x4 - core index']
  #allocation1 [shape = 'u32[144,128]{1,0:T(1,128)}', space=vmem, size = 0x12000, scoped, tag = 'internal scratch']
  %s0 = inlined_call_operand.vmem [shape: f32[16,32], index: 0, kind: input, shape index: {}]
  %s1 = inlined_call_operand.vmem [shape: f32[1,32], index: 1, kind: input, shape index: {}]
  %s2 = inlined_call_operand.vmem [shape: f32[1,32], index: 2, kind: input, shape index: {}]
  %s3 = inlined_call_operand.vmem [shape: f32[16,32], index: 3, kind: output, shape index: {}]
  %s4 = sld [smem:[#allocation0]]
  $region22: #{encoder_forward.18} parent=0
    _
  %s6 = ssub.s32 1, %s4
  %s7 = scalar_select 0, %s6, %s4
  // Predicated region
  $region2: #{encoder_forward.18} parent=0 // pred_check
    _
  $region3: #{encoder_forward.18} parent=0 // pred_check_branch
    %9 = sbr.rel (0) target = $region5
  $region4: #{encoder_forward.18} parent=0 // pred_region
    _
  $region5: #{encoder_forward.18} parent=0 // pred_fallthru
    _
  // Predicated region
  $region6: #{encoder_forward.18} parent=0 // pred_check
    _
  $region7: #{encoder_forward.18} parent=0 // pred_check_branch
    %11 = sbr.rel (0) target = $region9
  $region8: #{encoder_forward.18} parent=0 // pred_region
    _
  $region9: #{encoder_forward.18} parent=0 // pred_fallthru
    _
  // Predicated region
  $region10: #{encoder_forward.18} parent=0 // pred_check
    _
  $region11: #{encoder_forward.18} parent=0 // pred_check_branch
    %13 = sbr.rel (0) target = $region13
  $region12: #{encoder_forward.18} parent=0 // pred_region
    _
  $region13: #{encoder_forward.18} parent=0 // pred_fallthru
    _
  %v14 = vld [vmem:[%s0] sm:$0xff]
  %v15 = vld [vmem:[%s0 + $0x8] sm:$0xff]
  %vm16 = vcmask 261120
  %v17 = vsel %vm16, %v14, 0.0
  %18 = vadd.xlane.f32.xlu0 %v17
  %v19 = vpop.xlane.xlu0 %18
  %v20 = vsel %vm16, %v15, 0.0
  %21 = vadd.xlane.f32.xlu0 %v20
  %v22 = vpop.xlane.xlu0 %21
  %v23 = vrcp.pop 32.0
  %v24 = vmul.f32 %v19, %v23
  %v25 = vmul.f32 %v22, %v23
  %v26 = vsub.f32 %v14, %v24
  %v27 = vsub.f32 %v15, %v25
  %v28 = vmul.f32 %v26, %v26
  %v29 = vmul.f32 %v27, %v27
  %v30 = vsel %vm16, %v28, 0.0
  %31 = vadd.xlane.f32.xlu0 %v30
  %v32 = vpop.xlane.xlu0 %31
  %v33 = vsel %vm16, %v29, 0.0
  %34 = vadd.xlane.f32.xlu0 %v33
  %v35 = vpop.xlane.xlu0 %34
  %v36 = vmul.f32 %v32, %v23
  %v37 = vmul.f32 %v35, %v23
  %v38 = vadd.f32 %v36, 1e-05
  %v39 = vadd.f32 %v37, 1e-05
  %v40 = vrsqrt.pop %v38
  %v41 = vrsqrt.pop %v39
  %v42 = vmul.f32 %v26, %v40
  %v43 = vmul.f32 %v27, %v41
  %v44 = vld [vmem:[%s1] sm:$0x1]
  %v46 = vlaneseq
  %v47 = vshrl.u32 %v46, 7
  %v48 = vsub.s32 0, %v47
  %v49 = vrot.slane %v44, %v48
  %v51 = vmul.f32 %v42, %v49
  %v52 = vmul.f32 %v43, %v49
  %v53 = vld [vmem:[%s2] sm:$0x1]
  %v55 = vlaneseq
  %v56 = vshrl.u32 %v55, 7
  %v57 = vsub.s32 0, %v56
  %v58 = vrot.slane %v53, %v57
  %v60 = vadd.f32 %v51, %v58
  %v61 = vadd.f32 %v52, %v58
  %62 = vst.msk [vmem:[%s3] sm:$0xff] %vm16, %v60
  %63 = vst.msk [vmem:[%s3 + $0x8] sm:$0xff] %vm16, %v61
  // Predicated region
  $region14: #{encoder_forward.18} parent=0 // pred_check
    _
  $region15: #{encoder_forward.18} parent=0 // pred_check_branch
    %65 = sbr.rel (0) target = $region17
  $region16: #{encoder_forward.18} parent=0 // pred_region
    _
  $region17: #{encoder_forward.18} parent=0 // pred_fallthru
    _
  // Predicated region
  $region18: #{encoder_forward.18} parent=0 // pred_check
    _
  $region19: #{encoder_forward.18} parent=0 // pred_check_branch
    %67 = sbr.rel (0) target = $region21
  $region20: #{encoder_forward.18} parent=0 // pred_region
    _
  $region21: #{encoder_forward.18} parent=0 // pred_fallthru
    _

// kernel: encoder_forward.20
$region0: #{encoder_forward.20}
  #allocation0 [shape = 'u32[]', space=smem, size = 0x4, offset = 0x4, fixed_abs, tag = 'smem constant byte address 0x4 - core index']
  #allocation1 [shape = 'u32[144,128]{1,0:T(1,128)}', space=vmem, size = 0x12000, scoped, tag = 'internal scratch']
  %s0 = inlined_call_operand.vmem [shape: f32[16,128], index: 0, kind: input, shape index: {}]
  %s1 = inlined_call_operand.vmem [shape: bf16[128,128], index: 1, kind: input, shape index: {}]
  %s2 = inlined_call_operand.vmem [shape: f32[1,128], index: 2, kind: input, shape index: {}]
  %s3 = inlined_call_operand.vmem [shape: f32[16,128], index: 3, kind: output, shape index: {}]
  %s4 = sld [smem:[#allocation0]]
  $region22: #{encoder_forward.20} parent=0
    _
  %s6 = ssub.s32 1, %s4
  %s7 = scalar_select 0, %s6, %s4
  // Predicated region
  $region2: #{encoder_forward.20} parent=0 // pred_check
    _
  $region3: #{encoder_forward.20} parent=0 // pred_check_branch
    %9 = sbr.rel (0) target = $region5
  $region4: #{encoder_forward.20} parent=0 // pred_region
    _
  $region5: #{encoder_forward.20} parent=0 // pred_fallthru
    _
  // Predicated region
  $region6: #{encoder_forward.20} parent=0 // pred_check
    _
  $region7: #{encoder_forward.20} parent=0 // pred_check_branch
    %11 = sbr.rel (0) target = $region9
  $region8: #{encoder_forward.20} parent=0 // pred_region
    _
  $region9: #{encoder_forward.20} parent=0 // pred_fallthru
    _
  // Predicated region
  $region10: #{encoder_forward.20} parent=0 // pred_check
    _
  $region11: #{encoder_forward.20} parent=0 // pred_check_branch
    %13 = sbr.rel (0) target = $region13
  $region12: #{encoder_forward.20} parent=0 // pred_region
    _
  $region13: #{encoder_forward.20} parent=0 // pred_fallthru
    _
  %v15 = vld [vmem:[%s0] sm:$0xff]
  %v16 = vld [vmem:[%s0 + $0x8] sm:$0xff]
  %v17 = vpack.c.bf16 %v16, %v15
  %v18 = vld [vmem:[%s1] sm:$0xf]
  %v19 = vld [vmem:[%s1 + $0x4] sm:$0xf]
  %v20 = vld [vmem:[%s1 + $0x8] sm:$0xf]
  %v21 = vld [vmem:[%s1 + $0xc] sm:$0xf]
  %v22 = vld [vmem:[%s1 + $0x10] sm:$0xf]
  %v23 = vld [vmem:[%s1 + $0x14] sm:$0xf]
  %v24 = vld [vmem:[%s1 + $0x18] sm:$0xf]
  %v25 = vld [vmem:[%s1 + $0x1c] sm:$0xf]
  %v26 = vld [vmem:[%s1 + $0x20] sm:$0xf]
  %v27 = vld [vmem:[%s1 + $0x24] sm:$0xf]
  %v28 = vld [vmem:[%s1 + $0x28] sm:$0xf]
  %v29 = vld [vmem:[%s1 + $0x2c] sm:$0xf]
  %v30 = vld [vmem:[%s1 + $0x30] sm:$0xf]
  %v31 = vld [vmem:[%s1 + $0x34] sm:$0xf]
  %v32 = vld [vmem:[%s1 + $0x38] sm:$0xf]
  %v33 = vld [vmem:[%s1 + $0x3c] sm:$0xf]
  %v34 = vld [vmem:[%s2] sm:$0x1]
  %v36 = vlaneseq
  %v37 = vshrl.u32 %v36, 7
  %v38 = vsub.s32 0, %v37
  %v39 = vrot.slane %v34, %v38
  %v57 = vunpack.c.l.b16 %v18
  %v58 = vunpack.c.l.b16 %v19
  %v59 = vunpack.c.l.b16 %v20
  %v60 = vunpack.c.l.b16 %v21
  %v61 = vunpack.c.l.b16 %v22
  %v62 = vunpack.c.l.b16 %v23
  %v63 = vunpack.c.l.b16 %v24
  %v64 = vunpack.c.l.b16 %v25
  %v65 = vunpack.c.l.b16 %v26
  %v66 = vunpack.c.l.b16 %v27
  %v67 = vunpack.c.l.b16 %v28
  %v68 = vunpack.c.l.b16 %v29
  %v69 = vunpack.c.l.b16 %v30
  %v70 = vunpack.c.l.b16 %v31
  %v71 = vunpack.c.l.b16 %v32
  %v72 = vunpack.c.l.b16 %v33
  %v73 = vpack.c.b16 %v58, %v57
  %v74 = vpack.c.b16 %v60, %v59
  %v75 = vpack.c.b16 %v62, %v61
  %v76 = vpack.c.b16 %v64, %v63
  %v77 = vpack.c.b16 %v66, %v65
  %v78 = vpack.c.b16 %v68, %v67
  %v79 = vpack.c.b16 %v70, %v69
  %v80 = vpack.c.b16 %v72, %v71
  %89 = vmatprep.subr.bf16.mxu0 0
  %90 = vmatpush1.bf16.msra.mxu0 %v80
  %91 = vmatprep.subr.bf16.mxu0 0
  %92 = vmatpush1.bf16.msra.mxu0 %v79
  %93 = vmatprep.subr.bf16.mxu0 0
  %94 = vmatpush1.bf16.msra.mxu0 %v78
  %95 = vmatprep.subr.bf16.mxu0 0
  %96 = vmatpush1.bf16.msra.mxu0 %v77
  %97 = vmatprep.subr.bf16.mxu0 0
  %98 = vmatpush1.bf16.msra.mxu0 %v76
  %99 = vmatprep.subr.bf16.mxu0 0
  %100 = vmatpush1.bf16.msra.mxu0 %v75
  %101 = vmatprep.subr.bf16.mxu0 0
  %102 = vmatpush1.bf16.msra.mxu0 %v74
  %103 = vmatprep.subr.bf16.mxu0 0
  %104 = vmatpush1.bf16.msra.mxu0 %v73
  %105 = vmatprep.subr.bf16.mxu0 0
  %106 = vmatpush2.bf16.msra.mxu0 0
  %107 = vmatprep.subr.bf16.mxu0 0
  %108 = vmatpush2.bf16.msra.mxu0 0
  %109 = vmatprep.subr.bf16.mxu0 0
  %110 = vmatpush2.bf16.msra.mxu0 0
  %111 = vmatprep.subr.bf16.mxu0 0
  %112 = vmatpush2.bf16.msra.mxu0 0
  %113 = vmatprep.subr.bf16.mxu0 0
  %114 = vmatpush2.bf16.msra.mxu0 0
  %115 = vmatprep.subr.bf16.mxu0 0
  %116 = vmatpush2.bf16.msra.mxu0 0
  %117 = vmatprep.subr.bf16.mxu0 0
  %118 = vmatpush2.bf16.msra.mxu0 0
  %119 = vmatprep.subr.bf16.mxu0 0
  %120 = vmatpush2.bf16.msra.mxu0 0
  %121 = vmatprep.mubr.bf16.mxu0 0
  %122 = vmatmul.mubr.bf16.gmra.mxu0 %v17
  %v123 = vpop.f32.mrf.mxu0
  %v124 = vadd.f32 %v39, %v123
  %v125 = vpop.f32.mrf.mxu0
  %v126 = vpop.f32.mrf.mxu0
  %v127 = vadd.f32 %v39, %v126
  %v128 = vpop.f32.mrf.mxu0
  %129 = vdwg.mxu0
  %130 = vst [vmem:[%s3] sm:$0xff] %v124
  %131 = vst [vmem:[%s3 + $0x8] sm:$0xff] %v127
  // Predicated region
  $region14: #{encoder_forward.20} parent=0 // pred_check
    _
  $region15: #{encoder_forward.20} parent=0 // pred_check_branch
    %133 = sbr.rel (0) target = $region17
  $region16: #{encoder_forward.20} parent=0 // pred_region
    _
  $region17: #{encoder_forward.20} parent=0 // pred_fallthru
    _
  // Predicated region
  $region18: #{encoder_forward.20} parent=0 // pred_check
    _
  $region19: #{encoder_forward.20} parent=0 // pred_check_branch
    %135 = sbr.rel (0) target = $region21
  $region20: #{encoder_forward.20} parent=0 // pred_region
    _
  $region21: #{encoder_forward.20} parent=0 // pred_fallthru
    _

// kernel: encoder_forward.22
$region0: #{encoder_forward.22}
  #allocation0 [shape = 'u32[]', space=smem, size = 0x4, offset = 0x4, fixed_abs, tag = 'smem constant byte address 0x4 - core index']
  #allocation1 [shape = 'u32[144,128]{1,0:T(1,128)}', space=vmem, size = 0x12000, scoped, tag = 'internal scratch']
  %s0 = inlined_call_operand.vmem [shape: f32[2,4,8,8], index: 0, kind: input, shape index: {}]
  %s1 = inlined_call_operand.vmem [shape: f32[2,4,8,8], index: 1, kind: input, shape index: {}]
  %s2 = inlined_call_operand.vmem [shape: f32[2,4,8,8], index: 2, kind: input, shape index: {}]
  %s3 = inlined_call_operand.vmem [shape: f32[2,8,8], index: 3, kind: input, shape index: {}]
  %s4 = inlined_call_operand.vmem [shape: f32[2,4,8,8], index: 4, kind: output, shape index: {0}]
  %s5 = inlined_call_operand.hbm [shape: f32[2,4,8,8], index: 5, kind: output, shape index: {1}]
  %6 = xla_tuple %s4, %s5
  %s7 = sld [smem:[#allocation0]]
  $region57: #{encoder_forward.22} parent=0
    _
  %s9 = ssub.s32 1, %s7
  %s10 = scalar_select 0, %s9, %s7
  $region1: #{encoder_forward.22} parent=0
    #allocation2 [shape = 'u8[8192]{0}', space=vmem, size = 0x2000, scoped, tag = 'output window, operand 1']
    #allocation3 [shape = 's32[2]{0}', space=sflag, size = 0x8, scoped, tag = 'scoped memory for encoder_forward.22']
    %11 = vsyncpa [#allocation3], 0
    %s12 = scalar_lea.sflag [#allocation3], 1
    %13 = vsyncpa %s12, 0
    loop: start=0, step=1, limit=10
    $region2: #{encoder_forward.22} parent=1 // loop_pre_header
      _
    $region3: #{encoder_forward.22} parent=1 // loop_header
      %s15 = sphi 0, %s19
      %p16 = scmp.ge.s32.totalorder %s15, 10
      %s22 = sphi 0, %s34
      %s23 = sphi 0, %s30
      %s24 = sphi 0, %s22
      %s25 = sphi 0, %s23
      %s26 = sphi 0, %s24
      %s27 = sphi 0, %s25
      %s39 = sphi 0, %s41
      %s42 = sphi 0, %s39
      %s43 = sphi 0, %s42
      %s59 = sphi 0, %s43
      %s67 = sphi 0, %s69
      %s70 = sphi 0, %s67
      %s71 = sphi 0, %s70
      %s87 = sphi 0, %s71
      %s95 = sphi 0, %s97
      %s98 = sphi 0, %s95
      %s99 = sphi 0, %s98
      %s115 = sphi 0, %s99
      %s121 = sphi 0, %s123
      %s124 = sphi 0, %s121
      %s125 = sphi 0, %s124
      %s141 = sphi 0, %s125
      %s149 = sphi 0, %s151
      %s152 = sphi 0, %s149
      %s153 = sphi 0, %s152
      %s169 = sphi 0, %s153
      %s177 = sphi 0, %s179
      %s180 = sphi 0, %s177
      %s181 = sphi 0, %s180
      %s197 = sphi 0, %s181
    $region4: #{encoder_forward.22} parent=1 // loop_header_branch
      %18 = sbr.rel (%p16) target = $region8
    $region5: #{encoder_forward.22} parent=1 // loop_body
      %s20 = ssub.s32 %s15, 1
      %s21 = ssub.s32 %s15, 2
      %s28 = sadd.s32 1, %s23
      %p29 = scmp.ge.s32.totalorder %s28, 4
      %s30 = scalar_select %p29, 0, %s28
      %s31 = sadd.s32 1, %s22
      %s32 = scalar_select %p29, %s31, %s22
      %p33 = scmp.ge.s32.totalorder %s32, 2
      %s34 = scalar_select %p33, 0, %s32
      %s35 = ssub.s32 %s22, %s34
      %s36 = ssub.s32 %s23, %s30
      %s37 = sor.u32 %s35, %s36
      %p38 = scmp.eq.s32.totalorder %s37, 0
      %s40 = sadd.s32 %s39, 1
      %s41 = scalar_select %p38, %s39, %s40
      %p44 = pneg %p38
      %p45 = scmp.eq.s32.totalorder %s15, 7
      %p46 = por %p44, %p45
      %p47 = scmp.ne.s32.totalorder %s39, %s42
      %p48 = scmp.eq.s32.totalorder %s15, 0
      %p49 = por %p47, %p48
      %p50 = scmp.ne.s32.totalorder %s39, %s42
      %p51 = scmp.eq.s32.totalorder %s20, 7
      %p52 = por %p50, %p51
      %p53 = scmp.ne.s32.totalorder %s42, %s43
      %p54 = scmp.eq.s32.totalorder %s20, 0
      %p55 = por %p53, %p54
      %p56 = scmp.ne.s32.totalorder %s42, %s43
      %p57 = scmp.eq.s32.totalorder %s21, 7
      %p58 = por %p56, %p57
      %p60 = scmp.ne.s32.totalorder %s43, %s59
      %p61 = scmp.eq.s32.totalorder %s21, 0
      %p62 = por %p60, %p61
      %s63 = ssub.s32 %s22, %s34
      %s64 = ssub.s32 %s23, %s30
      %s65 = sor.u32 %s63, %s64
      %p66 = scmp.eq.s32.totalorder %s65, 0
      %s68 = sadd.s32 %s67, 1
      %s69 = scalar_select %p66, %s67, %s68
      %p72 = pneg %p66
      %p73 = scmp.eq.s32.totalorder %s15, 7
      %p74 = por %p72, %p73
      %p75 = scmp.ne.s32.totalorder %s67, %s70
      %p76 = scmp.eq.s32.totalorder %s15, 0
      %p77 = por %p75, %p76
      %p78 = scmp.ne.s32.totalorder %s67, %s70
      %p79 = scmp.eq.s32.totalorder %s20, 7
      %p80 = por %p78, %p79
      %p81 = scmp.ne.s32.totalorder %s70, %s71
      %p82 = scmp.eq.s32.totalorder %s20, 0
      %p83 = por %p81, %p82
      %p84 = scmp.ne.s32.totalorder %s70, %s71
      %p85 = scmp.eq.s32.totalorder %s21, 7
      %p86 = por %p84, %p85
      %p88 = scmp.ne.s32.totalorder %s71, %s87
      %p89 = scmp.eq.s32.totalorder %s21, 0
      %p90 = por %p88, %p89
      %s91 = ssub.s32 %s22, %s34
      %s92 = ssub.s32 %s23, %s30
      %s93 = sor.u32 %s91, %s92
      %p94 = scmp.eq.s32.totalorder %s93, 0
      %s96 = sadd.s32 %s95, 1
      %s97 = scalar_select %p94, %s95, %s96
      %p100 = pneg %p94
      %p101 = scmp.eq.s32.totalorder %s15, 7
      %p102 = por %p100, %p101
      %p103 = scmp.ne.s32.totalorder %s95, %s98
      %p104 = scmp.eq.s32.totalorder %s15, 0
      %p105 = por %p103, %p104
      %p106 = scmp.ne.s32.totalorder %s95, %s98
      %p107 = scmp.eq.s32.totalorder %s20, 7
      %p108 = por %p106, %p107
      %p109 = scmp.ne.s32.totalorder %s98, %s99
      %p110 = scmp.eq.s32.totalorder %s20, 0
      %p111 = por %p109, %p110
      %p112 = scmp.ne.s32.totalorder %s98, %s99
      %p113 = scmp.eq.s32.totalorder %s21, 7
      %p114 = por %p112, %p113
      %p116 = scmp.ne.s32.totalorder %s99, %s115
      %p117 = scmp.eq.s32.totalorder %s21, 0
      %p118 = por %p116, %p117
      %s119 = ssub.s32 %s22, %s34
      %p120 = scmp.eq.s32.totalorder %s119, 0
      %s122 = sadd.s32 %s121, 1
      %s123 = scalar_select %p120, %s121, %s122
      %p126 = pneg %p120
      %p127 = scmp.eq.s32.totalorder %s15, 7
      %p128 = por %p126, %p127
      %p129 = scmp.ne.s32.totalorder %s121, %s124
      %p130 = scmp.eq.s32.totalorder %s15, 0
      %p131 = por %p129, %p130
      %p132 = scmp.ne.s32.totalorder %s121, %s124
      %p133 = scmp.eq.s32.totalorder %s20, 7
      %p134 = por %p132, %p133
      %p135 = scmp.ne.s32.totalorder %s124, %s125
      %p136 = scmp.eq.s32.totalorder %s20, 0
      %p137 = por %p135, %p136
      %p138 = scmp.ne.s32.totalorder %s124, %s125
      %p139 = scmp.eq.s32.totalorder %s21, 7
      %p140 = por %p138, %p139
      %p142 = scmp.ne.s32.totalorder %s125, %s141
      %p143 = scmp.eq.s32.totalorder %s21, 0
      %p144 = por %p142, %p143
      %s145 = ssub.s32 %s22, %s34
      %s146 = ssub.s32 %s23, %s30
      %s147 = sor.u32 %s145, %s146
      %p148 = scmp.eq.s32.totalorder %s147, 0
      %s150 = sadd.s32 %s149, 1
      %s151 = scalar_select %p148, %s149, %s150
      %p154 = pneg %p148
      %p155 = scmp.eq.s32.totalorder %s15, 7
      %p156 = por %p154, %p155
      %p157 = scmp.ne.s32.totalorder %s149, %s152
      %p158 = scmp.eq.s32.totalorder %s15, 0
      %p159 = por %p157, %p158
      %p160 = scmp.ne.s32.totalorder %s149, %s152
      %p161 = scmp.eq.s32.totalorder %s20, 7
      %p162 = por %p160, %p161
      %p163 = scmp.ne.s32.totalorder %s152, %s153
      %p164 = scmp.eq.s32.totalorder %s20, 0
      %p165 = por %p163, %p164
      %p166 = scmp.ne.s32.totalorder %s152, %s153
      %p167 = scmp.eq.s32.totalorder %s21, 7
      %p168 = por %p166, %p167
      %p170 = scmp.ne.s32.totalorder %s153, %s169
      %p171 = scmp.eq.s32.totalorder %s21, 0
      %p172 = por %p170, %p171
      %s173 = ssub.s32 %s22, %s34
      %s174 = ssub.s32 %s23, %s30
      %s175 = sor.u32 %s173, %s174
      %p176 = scmp.eq.s32.totalorder %s175, 0
      %s178 = sadd.s32 %s177, 1
      %s179 = scalar_select %p176, %s177, %s178
      %p182 = pneg %p176
      %p183 = scmp.eq.s32.totalorder %s15, 7
      %p184 = por %p182, %p183
      %p185 = scmp.ne.s32.totalorder %s177, %s180
      %p186 = scmp.eq.s32.totalorder %s15, 0
      %p187 = por %p185, %p186
      %p188 = scmp.ne.s32.totalorder %s177, %s180
      %p189 = scmp.eq.s32.totalorder %s20, 7
      %p190 = por %p188, %p189
      %p191 = scmp.ne.s32.totalorder %s180, %s181
      %p192 = scmp.eq.s32.totalorder %s20, 0
      %p193 = por %p191, %p192
      %p194 = scmp.ne.s32.totalorder %s180, %s181
      %p195 = scmp.eq.s32.totalorder %s21, 7
      %p196 = por %p194, %p195
      %p198 = scmp.ne.s32.totalorder %s181, %s197
      %p199 = scmp.eq.s32.totalorder %s21, 0
      %p200 = por %p198, %p199
      %p201 = scmp.le.s32.totalorder 1, %s15
      %p202 = scmp.lt.s32.totalorder %s15, 9
      %p203 = pnand %p201, %p202
      %p204 = pneg %p203
      // Predicated region
      $region9: #{encoder_forward.22} parent=5 // pred_check
        _
      $region10: #{encoder_forward.22} parent=5 // pred_check_branch
        %206 = sbr.rel (%p203) target = $region12
      $region11: #{encoder_forward.22} parent=5 // pred_region
        %s207 = ssub.s32 %s15, 1
      $region12: #{encoder_forward.22} parent=5 // pred_fallthru
        _
      %p208 = scmp.lt.s32.totalorder %s15, 8
      // Predicated region
      $region13: #{encoder_forward.22} parent=5 // pred_check
        %p209 = pneg %p208
      $region14: #{encoder_forward.22} parent=5 // pred_check_branch
        %211 = sbr.rel (%p209) target = $region16
      $region15: #{encoder_forward.22} parent=5 // pred_region
        // Predicated region
        $region17: #{encoder_forward.22} parent=15 // pred_check
          %p212 = pneg %p49
        $region18: #{encoder_forward.22} parent=15 // pred_check_branch
          %214 = sbr.rel (%p212) target = $region20
        $region19: #{encoder_forward.22} parent=15 // pred_region
          %p215 = scmp.lt.s32.totalorder %s22, 1
          %s216 = scalar_select %p215, %s22, 1
          %p217 = scmp.lt.s32.totalorder %s23, 3
          %s218 = scalar_select %p217, %s23, 3
          %s219 = smul.addr %s216, 4
          %s220 = sadd.s32 %s218, %s219
          %s221 = smul.addr %s220, 8
          %s222 = scalar_lea.vmem %s0, %s221
        $region20: #{encoder_forward.22} parent=15 // pred_fallthru
          _
        // Predicated region
        $region21: #{encoder_forward.22} parent=15 // pred_check
          %p223 = pneg %p77
        $region22: #{encoder_forward.22} parent=15 // pred_check_branch
          %225 = sbr.rel (%p223) target = $region24
        $region23: #{encoder_forward.22} parent=15 // pred_region
          %p226 = scmp.lt.s32.totalorder %s22, 1
          %s227 = scalar_select %p226, %s22, 1
          %p228 = scmp.lt.s32.totalorder %s23, 3
          %s229 = scalar_select %p228, %s23, 3
          %s230 = smul.addr %s227, 4
          %s231 = sadd.s32 %s229, %s230
          %s232 = smul.addr %s231, 8
          %s233 = scalar_lea.vmem %s1, %s232
        $region24: #{encoder_forward.22} parent=15 // pred_fallthru
          _
        // Predicated region
        $region25: #{encoder_forward.22} parent=15 // pred_check
          %p234 = pneg %p105
        $region26: #{encoder_forward.22} parent=15 // pred_check_branch
          %236 = sbr.rel (%p234) target = $region28
        $region27: #{encoder_forward.22} parent=15 // pred_region
          %p237 = scmp.lt.s32.totalorder %s22, 1
          %s238 = scalar_select %p237, %s22, 1
          %p239 = scmp.lt.s32.totalorder %s23, 3
          %s240 = scalar_select %p239, %s23, 3
          %s241 = smul.addr %s238, 4
          %s242 = sadd.s32 %s240, %s241
          %s243 = smul.addr %s242, 8
          %s244 = scalar_lea.vmem %s2, %s243
        $region28: #{encoder_forward.22} parent=15 // pred_fallthru
          _
        // Predicated region
        $region29: #{encoder_forward.22} parent=15 // pred_check
          %p245 = pneg %p131
        $region30: #{encoder_forward.22} parent=15 // pred_check_branch
          %247 = sbr.rel (%p245) target = $region32
        $region31: #{encoder_forward.22} parent=15 // pred_region
          %p248 = scmp.lt.s32.totalorder %s22, 1
          %s249 = scalar_select %p248, %s22, 1
          %s250 = smul.addr %s249, 8
          %s251 = scalar_lea.vmem %s3, %s250
        $region32: #{encoder_forward.22} parent=15 // pred_fallthru
          _
      $region16: #{encoder_forward.22} parent=5 // pred_fallthru
        _
      %p252 = scmp.le.s32.totalorder 1, %s15
      %p253 = scmp.lt.s32.totalorder %s15, 9
      %p254 = pnand %p252, %p253
      %p255 = pneg %p254
      // Predicated region
      $region33: #{encoder_forward.22} parent=5 // pred_check
        _
      $region34: #{encoder_forward.22} parent=5 // pred_check_branch
        %257 = sbr.rel (%p254) target = $region36
      $region35: #{encoder_forward.22} parent=5 // pred_region
        %s258 = ssub.s32 %s15, 1
        %p259 = scmp.lt.s32.totalorder %s24, 1
        %s260 = scalar_select %p259, %s24, 1
        %p261 = scmp.lt.s32.totalorder %s25, 3
        %s262 = scalar_select %p261, %s25, 3
        %s263 = smul.addr %s260, 4
        %s264 = sadd.s32 %s262, %s263
        %s265 = smul.addr %s264, 8
        %s266 = scalar_lea.vmem %s0, %s265
        %p267 = pneg %p55
        %p268 = pneg %p52
        %p269 = scmp.lt.s32.totalorder %s24, 1
        %s270 = scalar_select %p269, %s24, 1
        %p271 = scmp.lt.s32.totalorder %s25, 3
        %s272 = scalar_select %p271, %s25, 3
        %s273 = smul.addr %s270, 4
        %s274 = sadd.s32 %s272, %s273
        %s275 = smul.addr %s274, 8
        %s276 = scalar_lea.vmem %s1, %s275
        %p277 = pneg %p83
        %p278 = pneg %p80
        %p279 = scmp.lt.s32.totalorder %s24, 1
        %s280 = scalar_select %p279, %s24, 1
        %p281 = scmp.lt.s32.totalorder %s25, 3
        %s282 = scalar_select %p281, %s25, 3
        %s283 = smul.addr %s280, 4
        %s284 = sadd.s32 %s282, %s283
        %s285 = smul.addr %s284, 8
        %s286 = scalar_lea.vmem %s2, %s285
        %p287 = pneg %p111
        %p288 = pneg %p108
        %p289 = scmp.lt.s32.totalorder %s24, 1
        %s290 = scalar_select %p289, %s24, 1
        %s291 = smul.addr %s290, 8
        %s292 = scalar_lea.vmem %s3, %s291
        %p293 = pneg %p137
        %p294 = pneg %p134
        %p295 = pneg %p165
        %p296 = pneg %p162
        %p297 = scmp.lt.s32.totalorder %s24, 1
        %s298 = scalar_select %p297, %s24, 1
        %p299 = scmp.lt.s32.totalorder %s25, 3
        %s300 = scalar_select %p299, %s25, 3
        %s301 = smul.addr %s298, 4
        %s302 = sadd.s32 %s300, %s301
        %s303 = smul.addr %s302, 8
        %s304 = scalar_lea.vmem %s4, %s303
        %p305 = pneg %p193
        %p306 = pneg %p190
        %s307 = sand.u32 %s180, 1
        %s308 = scalar_lea.sflag [#allocation3], %s307
        %s309 = sand.u32 %s180, 1
        %s310 = smul.addr %s309, 8
        %s311 = scalar_lea.vmem [#allocation2], %s310
        %p312 = scmp.lt.s32.totalorder %s24, 1
        %s313 = scalar_select %p312, %s24, 1
        %p314 = scmp.lt.s32.totalorder %s25, 3
        %s315 = scalar_select %p314, %s25, 3
        %s316 = smul.addr %s313, 4
        %s317 = sadd.s32 %s315, %s316
        %s318 = smul.addr %s317, 8
        %s319 = scalar_lea.vmem %s0, %s318
        %p320 = scmp.lt.s32.totalorder %s24, 1
        %s321 = scalar_select %p320, %s24, 1
        %p322 = scmp.lt.s32.totalorder %s25, 3
        %s323 = scalar_select %p322, %s25, 3
        %s324 = smul.addr %s321, 4
        %s325 = sadd.s32 %s323, %s324
        %s326 = smul.addr %s325, 8
        %s327 = scalar_lea.vmem %s1, %s326
        %p328 = scmp.lt.s32.totalorder %s24, 1
        %s329 = scalar_select %p328, %s24, 1
        %p330 = scmp.lt.s32.totalorder %s25, 3
        %s331 = scalar_select %p330, %s25, 3
        %s332 = smul.addr %s329, 4
        %s333 = sadd.s32 %s331, %s332
        %s334 = smul.addr %s333, 8
        %s335 = scalar_lea.vmem %s2, %s334
        %p336 = scmp.lt.s32.totalorder %s24, 1
        %s337 = scalar_select %p336, %s24, 1
        %s338 = smul.addr %s337, 8
        %s339 = scalar_lea.vmem %s3, %s338
        %p340 = scmp.lt.s32.totalorder %s24, 1
        %s341 = scalar_select %p340, %s24, 1
        %p342 = scmp.lt.s32.totalorder %s25, 3
        %s343 = scalar_select %p342, %s25, 3
        %s344 = smul.addr %s341, 4
        %s345 = sadd.s32 %s343, %s344
        %s346 = smul.addr %s345, 8
        %s347 = scalar_lea.vmem %s4, %s346
        %v348 = vld [vmem:[%s319] sm:$0xff]
        %v349 = vld [vmem:[%s327] sm:$0xff]
        %v350 = vld [vmem:[%s335] sm:$0xff]
        %vm351 = vcmask 64512
        %v353 = vsel %vm351, %v348, 0
        %v356 = vsel %vm351, %v349, 0
        %358 = vmatprep.subr.mxu0 0.0
        %359 = vmatpush1.xpose.msra.mxu0 0.0
        %360 = vmatprep.subr.mxu0 0.0
        %361 = vmatpush1.xpose.msra.mxu0 0.0
        %362 = vmatprep.subr.mxu0 0.0
        %363 = vmatpush1.xpose.msra.mxu0 0.0
        %364 = vmatprep.subr.mxu0 0.0
        %365 = vmatpush1.xpose.msra.mxu0 0.0
        %366 = vmatprep.subr.mxu0 0.0
        %367 = vmatpush1.xpose.msra.mxu0 0.0
        %368 = vmatprep.subr.mxu0 0.0
        %369 = vmatpush1.xpose.msra.mxu0 0.0
        %370 = vmatprep.subr.mxu0 0.0
        %371 = vmatpush1.xpose.msra.mxu0 0.0
        %372 = vmatprep.subr.mxu0 0.0
        %373 = vmatpush1.xpose.msra.mxu0 0.0
        %374 = vmatprep.subr.mxu0 0.0
        %375 = vmatpush1.xpose.msra.mxu0 0.0
        %376 = vmatprep.subr.mxu0 0.0
        %377 = vmatpush1.xpose.msra.mxu0 0.0
        %378 = vmatprep.subr.mxu0 0.0
        %379 = vmatpush1.xpose.msra.mxu0 0.0
        %380 = vmatprep.subr.mxu0 0.0
        %381 = vmatpush1.xpose.msra.mxu0 0.0
        %382 = vmatprep.subr.mxu0 0.0
        %383 = vmatpush1.xpose.msra.mxu0 0.0
        %384 = vmatprep.subr.mxu0 0.0
        %385 = vmatpush1.xpose.msra.mxu0 0.0
        %386 = vmatprep.subr.mxu0 0.0
        %387 = vmatpush1.xpose.msra.mxu0 0.0
        %388 = vmatprep.subr.mxu0 0.0
        %389 = vmatpush1.xpose.msra.mxu0 %v356
        %390 = vmatprep.subr.mxu0 0.0
        %391 = vmatpush2.xpose.msra.mxu0 0.0
        %392 = vmatprep.subr.mxu0 0.0
        %393 = vmatpush2.xpose.msra.mxu0 0.0
        %394 = vmatprep.subr.mxu0 0.0
        %395 = vmatpush2.xpose.msra.mxu0 0.0
        %396 = vmatprep.subr.mxu0 0.0
        %397 = vmatpush2.xpose.msra.mxu0 0.0
        %398 = vmatprep.subr.mxu0 0.0
        %399 = vmatpush2.xpose.msra.mxu0 0.0
        %400 = vmatprep.subr.mxu0 0.0
        %401 = vmatpush2.xpose.msra.mxu0 0.0
        %402 = vmatprep.subr.mxu0 0.0
        %403 = vmatpush2.xpose.msra.mxu0 0.0
        %404 = vmatprep.subr.mxu0 0.0
        %405 = vmatpush2.xpose.msra.mxu0 0.0
        %406 = vmatprep.subr.mxu0 0.0
        %407 = vmatpush2.xpose.msra.mxu0 0.0
        %408 = vmatprep.subr.mxu0 0.0
        %409 = vmatpush2.xpose.msra.mxu0 0.0
        %410 = vmatprep.subr.mxu0 0.0
        %411 = vmatpush2.xpose.msra.mxu0 0.0
        %412 = vmatprep.subr.mxu0 0.0
        %413 = vmatpush2.xpose.msra.mxu0 0.0
        %414 = vmatprep.subr.mxu0 0.0
        %415 = vmatpush2.xpose.msra.mxu0 0.0
        %416 = vmatprep.subr.mxu0 0.0
        %417 = vmatpush2.xpose.msra.mxu0 0.0
        %418 = vmatprep.subr.mxu0 0.0
        %419 = vmatpush2.xpose.msra.mxu0 0.0
        %420 = vmatprep.subr.mxu0 0.0
        %421 = vmatpush2.xpose.msra.mxu0 0.0
        %422 = vmatprep.mubr.f32.mxu0 0.0
        %423 = vmatmul.mubr.f32.gmra.mxu0 %v353
        %v424 = vpop.f32.mrf.mxu0
        %v425 = vadd.f32 0.0, %v424
        %v426 = vpop.f32.mrf.mxu0
        %427 = vdwg.mxu0
        %v428 = vmul.f32 %v425, 0.35355338
        %v429 = vld [vmem:[%s339] sm:$0xff]
        %vm430 = vcmp.eq.f32.partialorder %v429, 0.0
        %v431 = vsel %vm430, -60000.0, %v428
        %v432 = vsel %vm351, %v431, -inf
        %433 = vmax.xlane.f32.xlu0 %v432
        %v434 = vpop.xlane.xlu0 %433
        %v435 = vsub.f32 %v431, %v434
        %v436 = vmul.f32 %v435, 1.442695
        %v437 = vpow.pop %v436
        %v438 = vsel %vm351, %v437, 0.0
        %439 = vadd.xlane.f32.xlu0 %v438
        %v440 = vpop.xlane.xlu0 %439
        %v441 = vrcp.pop %v440
        %v442 = vmul.f32 %v437, %v441
        %v444 = vsel %vm351, %v442, 0
        %446 = vmatprep.subr.mxu0 0.0
        %447 = vmatpush1.msra.mxu0 0.0
        %448 = vmatprep.subr.mxu0 0.0
        %449 = vmatpush1.msra.mxu0 0.0
        %450 = vmatprep.subr.mxu0 0.0
        %451 = vmatpush1.msra.mxu0 0.0
        %452 = vmatprep.subr.mxu0 0.0
        %453 = vmatpush1.msra.mxu0 0.0
        %454 = vmatprep.subr.mxu0 0.0
        %455 = vmatpush1.msra.mxu0 0.0
        %456 = vmatprep.subr.mxu0 0.0
        %457 = vmatpush1.msra.mxu0 0.0
        %458 = vmatprep.subr.mxu0 0.0
        %459 = vmatpush1.msra.mxu0 0.0
        %460 = vmatprep.subr.mxu0 0.0
        %461 = vmatpush1.msra.mxu0 0.0
        %462 = vmatprep.subr.mxu0 0.0
        %463 = vmatpush1.msra.mxu0 0.0
        %464 = vmatprep.subr.mxu0 0.0
        %465 = vmatpush1.msra.mxu0 0.0
        %466 = vmatprep.subr.mxu0 0.0
        %467 = vmatpush1.msra.mxu0 0.0
        %468 = vmatprep.subr.mxu0 0.0
        %469 = vmatpush1.msra.mxu0 0.0
        %470 = vmatprep.subr.mxu0 0.0
        %471 = vmatpush1.msra.mxu0 0.0
        %472 = vmatprep.subr.mxu0 0.0
        %473 = vmatpush1.msra.mxu0 0.0
        %474 = vmatprep.subr.mxu0 0.0
        %475 = vmatpush1.msra.mxu0 0.0
        %476 = vmatprep.subr.mxu0 0.0
        %477 = vmatpush1.msra.mxu0 %v350
        %478 = vmatprep.subr.mxu0 0.0
        %479 = vmatpush2.msra.mxu0 0.0
        %480 = vmatprep.subr.mxu0 0.0
        %481 = vmatpush2.msra.mxu0 0.0
        %482 = vmatprep.subr.mxu0 0.0
        %483 = vmatpush2.msra.mxu0 0.0
        %484 = vmatprep.subr.mxu0 0.0
        %485 = vmatpush2.msra.mxu0 0.0
        %486 = vmatprep.subr.mxu0 0.0
        %487 = vmatpush2.msra.mxu0 0.0
        %488 = vmatprep.subr.mxu0 0.0
        %489 = vmatpush2.msra.mxu0 0.0
        %490 = vmatprep.subr.mxu0 0.0
        %491 = vmatpush2.msra.mxu0 0.0
        %492 = vmatprep.subr.mxu0 0.0
        %493 = vmatpush2.msra.mxu0 0.0
        %494 = vmatprep.subr.mxu0 0.0
        %495 = vmatpush2.msra.mxu0 0.0
        %496 = vmatprep.subr.mxu0 0.0
        %497 = vmatpush2.msra.mxu0 0.0
        %498 = vmatprep.subr.mxu0 0.0
        %499 = vmatpush2.msra.mxu0 0.0
        %500 = vmatprep.subr.mxu0 0.0
        %501 = vmatpush2.msra.mxu0 0.0
        %502 = vmatprep.subr.mxu0 0.0
        %503 = vmatpush2.msra.mxu0 0.0
        %504 = vmatprep.subr.mxu0 0.0
        %505 = vmatpush2.msra.mxu0 0.0
        %506 = vmatprep.subr.mxu0 0.0
        %507 = vmatpush2.msra.mxu0 0.0
        %508 = vmatprep.subr.mxu0 0.0
        %509 = vmatpush2.msra.mxu0 0.0
        %510 = vmatprep.mubr.f32.mxu0 0.0
        %511 = vmatmul.mubr.f32.gmra.mxu0 %v444
        %v512 = vpop.f32.mrf.mxu0
        %v513 = vadd.f32 0.0, %v512
        %v514 = vpop.f32.mrf.mxu0
        %515 = vdwg.mxu0
        %516 = vst.msk [vmem:[%s347] sm:$0xff] %vm351, %v513
        %517 = vst.msk [vmem:[%s311] sm:$0xff] %vm351, %v442
        %p518 = scmp.lt.s32.totalorder %s24, 1
        %s519 = scalar_select %p518, %s24, 1
        %p520 = scmp.lt.s32.totalorder %s25, 3
        %s521 = scalar_select %p520, %s25, 3
        %s522 = smul.addr %s519, 4
        %s523 = sadd.s32 %s521, %s522
        %s524 = smul.addr %s523, 8
        %s525 = scalar_lea.vmem %s4, %s524
        %s526 = sand.u32 %s180, 1
        %s527 = scalar_lea.sflag [#allocation3], %s526
        %s528 = sand.u32 %s180, 1
        %s529 = smul.addr %s528, 8
        %s530 = scalar_lea.vmem [#allocation2], %s529
        // Predicated region
        $region37: #{encoder_forward.22} parent=35 // pred_check
          %p531 = pneg %p162
        $region38: #{encoder_forward.22} parent=35 // pred_check_branch
          %533 = sbr.rel (%p531) target = $region40
        $region39: #{encoder_forward.22} parent=35 // pred_region
          _
        $region40: #{encoder_forward.22} parent=35 // pred_fallthru
          _
        // Predicated region
        $region41: #{encoder_forward.22} parent=35 // pred_check
          %p534 = pneg %p190
        $region42: #{encoder_forward.22} parent=35 // pred_check_branch
          %536 = sbr.rel (%p534) target = $region44
        $region43: #{encoder_forward.22} parent=35 // pred_region
          %s538 = ssub.s32 128, 128
          %539 = vsyncadd %s527, %s538
          %s540 = smul.addr %s24, 4
          %s541 = sadd.s32 %s25, %s540
          %s542 = smul.addr %s541, 128
          %s543 = scalar_lea.hbm %s5, %s542
          %s545 = sshll.u32 %s530, 4
          %s546 = int_to_ptr.vmem [resolvable:$true] %s545
          %548 = dma.vmem_to_hbm [thread:$0]  %s546, 128, %s543, %s527
        $region44: #{encoder_forward.22} parent=35 // pred_fallthru
          _
      $region36: #{encoder_forward.22} parent=5 // pred_fallthru
        _
      %p549 = scmp.le.s32.totalorder 2, %s15
      // Predicated region
      $region45: #{encoder_forward.22} parent=5 // pred_check
        %p550 = pneg %p549
      $region46: #{encoder_forward.22} parent=5 // pred_check_branch
        %552 = sbr.rel (%p550) target = $region48
      $region47: #{encoder_forward.22} parent=5 // pred_region
        %s553 = ssub.s32 %s15, 2
        // Predicated region
        $region49: #{encoder_forward.22} parent=47 // pred_check
          %p554 = pneg %p168
        $region50: #{encoder_forward.22} parent=47 // pred_check_branch
          %556 = sbr.rel (%p554) target = $region52
        $region51: #{encoder_forward.22} parent=47 // pred_region
          %p557 = scmp.lt.s32.totalorder %s26, 1
          %s558 = scalar_select %p557, %s26, 1
          %p559 = scmp.lt.s32.totalorder %s27, 3
          %s560 = scalar_select %p559, %s27, 3
          %s561 = smul.addr %s558, 4
          %s562 = sadd.s32 %s560, %s561
          %s563 = smul.addr %s562, 8
          %s564 = scalar_lea.vmem %s4, %s563
        $region52: #{encoder_forward.22} parent=47 // pred_fallthru
          _
        // Predicated region
        $region53: #{encoder_forward.22} parent=47 // pred_check
          %p565 = pneg %p196
        $region54: #{encoder_forward.22} parent=47 // pred_check_branch
          %567 = sbr.rel (%p565) target = $region56
        $region55: #{encoder_forward.22} parent=47 // pred_region
          %s568 = sand.u32 %s181, 1
          %s569 = scalar_lea.sflag [#allocation3], %s568
          %s570 = sand.u32 %s181, 1
          %s571 = smul.addr %s570, 8
          %s572 = scalar_lea.vmem [#allocation2], %s571
          %573 = dma.done %s569, 128
        $region56: #{encoder_forward.22} parent=47 // pred_fallthru
          _
      $region48: #{encoder_forward.22} parent=5 // pred_fallthru
        _
    $region6: #{encoder_forward.22} parent=1 // loop_footer
      %s19 = sadd.s32 1, %s15
    $region7: #{encoder_forward.22} parent=1 // loop_footer_branch
      %14 = sbr.rel target = $region3
    $region8: #{encoder_forward.22} parent=1 // loop_exit
      _
    %574 = vsyncpa [#allocation3], 1
    %s575 = scalar_lea.sflag [#allocation3], 1
    %576 = vsyncpa %s575, 1

// kernel: encoder_forward.25
$region0: #{encoder_forward.25}
  #allocation0 [shape = 'u32[]', space=smem, size = 0x4, offset = 0x4, fixed_abs, tag = 'smem constant byte address 0x4 - core index']
  #allocation1 [shape = 'u32[144,128]{1,0:T(1,128)}', space=vmem, size = 0x12000, scoped, tag = 'internal scratch']
  #allocation2 [shape = 'f32[16,128]{1,0:T(8,128)}', space=vmem, size = 0x2000, scoped, tag = 'scratch operand']
  %s0 = inlined_call_operand.vmem [shape: f32[16,128], index: 0, kind: input, shape index: {}]
  %s1 = inlined_call_operand.vmem [shape: bf16[128,128], index: 1, kind: input, shape index: {}]
  %s2 = inlined_call_operand.vmem [shape: f32[1,128], index: 2, kind: input, shape index: {}]
  %s3 = inlined_call_operand.vmem [shape: bf16[128,128], index: 3, kind: input, shape index: {}]
  %s4 = inlined_call_operand.vmem [shape: f32[1,128], index: 4, kind: input, shape index: {}]
  %s5 = inlined_call_operand.vmem [shape: f32[16,128], index: 5, kind: output, shape index: {}]
  %s6 = sld [smem:[#allocation0]]
  $region38: #{encoder_forward.25} parent=0
    _
  %s8 = ssub.s32 1, %s6
  %s9 = scalar_select 0, %s8, %s6
  // Predicated region
  $region2: #{encoder_forward.25} parent=0 // pred_check
    _
  $region3: #{encoder_forward.25} parent=0 // pred_check_branch
    %11 = sbr.rel (0) target = $region5
  $region4: #{encoder_forward.25} parent=0 // pred_region
    _
  $region5: #{encoder_forward.25} parent=0 // pred_fallthru
    _
  // Predicated region
  $region6: #{encoder_forward.25} parent=0 // pred_check
    _
  $region7: #{encoder_forward.25} parent=0 // pred_check_branch
    %13 = sbr.rel (0) target = $region9
  $region8: #{encoder_forward.25} parent=0 // pred_region
    _
  $region9: #{encoder_forward.25} parent=0 // pred_fallthru
    _
  // Predicated region
  $region10: #{encoder_forward.25} parent=0 // pred_check
    _
  $region11: #{encoder_forward.25} parent=0 // pred_check_branch
    %15 = sbr.rel (0) target = $region13
  $region12: #{encoder_forward.25} parent=0 // pred_region
    _
  $region13: #{encoder_forward.25} parent=0 // pred_fallthru
    _
  // Predicated region
  $region14: #{encoder_forward.25} parent=0 // pred_check
    _
  $region15: #{encoder_forward.25} parent=0 // pred_check_branch
    %17 = sbr.rel (0) target = $region17
  $region16: #{encoder_forward.25} parent=0 // pred_region
    _
  $region17: #{encoder_forward.25} parent=0 // pred_fallthru
    _
  // Predicated region
  $region18: #{encoder_forward.25} parent=0 // pred_check
    _
  $region19: #{encoder_forward.25} parent=0 // pred_check_branch
    %19 = sbr.rel (0) target = $region21
  $region20: #{encoder_forward.25} parent=0 // pred_region
    _
  $region21: #{encoder_forward.25} parent=0 // pred_fallthru
    _
  %p21 = scmp.eq.s32.totalorder 0, 0
  // Predicated region
  $region22: #{encoder_forward.25} parent=0 // pred_check
    %p22 = pneg %p21
  $region23: #{encoder_forward.25} parent=0 // pred_check_branch
    %24 = sbr.rel (%p22) target = $region25
  $region24: #{encoder_forward.25} parent=0 // pred_region
    %25 = vst [vmem:[#allocation2] sm:$0xff] 0.0
    %26 = vst [vmem:[#allocation2 + $0x8] sm:$0xff] 0.0
  $region25: #{encoder_forward.25} parent=0 // pred_fallthru
    _
  %v27 = vld [vmem:[%s0] sm:$0xff]
  %v28 = vld [vmem:[%s0 + $0x8] sm:$0xff]
  %v29 = vpack.c.bf16 %v28, %v27
  %v30 = vld [vmem:[%s1] sm:$0xf]
  %v31 = vld [vmem:[%s1 + $0x4] sm:$0xf]
  %v32 = vld [vmem:[%s1 + $0x8] sm:$0xf]
  %v33 = vld [vmem:[%s1 + $0xc] sm:$0xf]
  %v34 = vld [vmem:[%s1 + $0x10] sm:$0xf]
  %v35 = vld [vmem:[%s1 + $0x14] sm:$0xf]
  %v36 = vld [vmem:[%s1 + $0x18] sm:$0xf]
  %v37 = vld [vmem:[%s1 + $0x1c] sm:$0xf]
  %v38 = vld [vmem:[%s1 + $0x20] sm:$0xf]
  %v39 = vld [vmem:[%s1 + $0x24] sm:$0xf]
  %v40 = vld [vmem:[%s1 + $0x28] sm:$0xf]
  %v41 = vld [vmem:[%s1 + $0x2c] sm:$0xf]
  %v42 = vld [vmem:[%s1 + $0x30] sm:$0xf]
  %v43 = vld [vmem:[%s1 + $0x34] sm:$0xf]
  %v44 = vld [vmem:[%s1 + $0x38] sm:$0xf]
  %v45 = vld [vmem:[%s1 + $0x3c] sm:$0xf]
  %v46 = vld [vmem:[%s2] sm:$0x1]
  %v48 = vlaneseq
  %v49 = vshrl.u32 %v48, 7
  %v50 = vsub.s32 0, %v49
  %v51 = vrot.slane %v46, %v50
  %v69 = vunpack.c.l.b16 %v30
  %v70 = vunpack.c.l.b16 %v31
  %v71 = vunpack.c.l.b16 %v32
  %v72 = vunpack.c.l.b16 %v33
  %v73 = vunpack.c.l.b16 %v34
  %v74 = vunpack.c.l.b16 %v35
  %v75 = vunpack.c.l.b16 %v36
  %v76 = vunpack.c.l.b16 %v37
  %v77 = vunpack.c.l.b16 %v38
  %v78 = vunpack.c.l.b16 %v39
  %v79 = vunpack.c.l.b16 %v40
  %v80 = vunpack.c.l.b16 %v41
  %v81 = vunpack.c.l.b16 %v42
  %v82 = vunpack.c.l.b16 %v43
  %v83 = vunpack.c.l.b16 %v44
  %v84 = vunpack.c.l.b16 %v45
  %v85 = vpack.c.b16 %v70, %v69
  %v86 = vpack.c.b16 %v72, %v71
  %v87 = vpack.c.b16 %v74, %v73
  %v88 = vpack.c.b16 %v76, %v75
  %v89 = vpack.c.b16 %v78, %v77
  %v90 = vpack.c.b16 %v80, %v79
  %v91 = vpack.c.b16 %v82, %v81
  %v92 = vpack.c.b16 %v84, %v83
  %101 = vmatprep.subr.bf16.mxu0 0
  %102 = vmatpush1.bf16.msra.mxu0 %v92
  %103 = vmatprep.subr.bf16.mxu0 0
  %104 = vmatpush1.bf16.msra.mxu0 %v91
  %105 = vmatprep.subr.bf16.mxu0 0
  %106 = vmatpush1.bf16.msra.mxu0 %v90
  %107 = vmatprep.subr.bf16.mxu0 0
  %108 = vmatpush1.bf16.msra.mxu0 %v89
  %109 = vmatprep.subr.bf16.mxu0 0
  %110 = vmatpush1.bf16.msra.mxu0 %v88
  %111 = vmatprep.subr.bf16.mxu0 0
  %112 = vmatpush1.bf16.msra.mxu0 %v87
  %113 = vmatprep.subr.bf16.mxu0 0
  %114 = vmatpush1.bf16.msra.mxu0 %v86
  %115 = vmatprep.subr.bf16.mxu0 0
  %116 = vmatpush1.bf16.msra.mxu0 %v85
  %117 = vmatprep.subr.bf16.mxu0 0
  %118 = vmatpush2.bf16.msra.mxu0 0
  %119 = vmatprep.subr.bf16.mxu0 0
  %120 = vmatpush2.bf16.msra.mxu0 0
  %121 = vmatprep.subr.bf16.mxu0 0
  %122 = vmatpush2.bf16.msra.mxu0 0
  %123 = vmatprep.subr.bf16.mxu0 0
  %124 = vmatpush2.bf16.msra.mxu0 0
  %125 = vmatprep.subr.bf16.mxu0 0
  %126 = vmatpush2.bf16.msra.mxu0 0
  %127 = vmatprep.subr.bf16.mxu0 0
  %128 = vmatpush2.bf16.msra.mxu0 0
  %129 = vmatprep.subr.bf16.mxu0 0
  %130 = vmatpush2.bf16.msra.mxu0 0
  %131 = vmatprep.subr.bf16.mxu0 0
  %132 = vmatpush2.bf16.msra.mxu0 0
  %133 = vmatprep.mubr.bf16.mxu0 0
  %134 = vmatmul.mubr.bf16.gmra.mxu0 %v29
  %v135 = vpop.f32.mrf.mxu0
  %v136 = vadd.f32 %v51, %v135
  %v137 = vpop.f32.mrf.mxu0
  %v138 = vpop.f32.mrf.mxu0
  %v139 = vadd.f32 %v51, %v138
  %v140 = vpop.f32.mrf.mxu0
  %141 = vdwg.mxu0
  %v142 = vmax.f32 %v136, 0.0
  %v143 = vmax.f32 %v139, 0.0
  %v144 = vld [vmem:[#allocation2] sm:$0xff]
  %v145 = vld [vmem:[#allocation2 + $0x8] sm:$0xff]
  %v146 = vpack.c.bf16 %v143, %v142
  %v147 = vld [vmem:[%s3] sm:$0xf]
  %v148 = vld [vmem:[%s3 + $0x4] sm:$0xf]
  %v149 = vld [vmem:[%s3 + $0x8] sm:$0xf]
  %v150 = vld [vmem:[%s3 + $0xc] sm:$0xf]
  %v151 = vld [vmem:[%s3 + $0x10] sm:$0xf]
  %v152 = vld [vmem:[%s3 + $0x14] sm:$0xf]
  %v153 = vld [vmem:[%s3 + $0x18] sm:$0xf]
  %v154 = vld [vmem:[%s3 + $0x1c] sm:$0xf]
  %v155 = vld [vmem:[%s3 + $0x20] sm:$0xf]
  %v156 = vld [vmem:[%s3 + $0x24] sm:$0xf]
  %v157 = vld [vmem:[%s3 + $0x28] sm:$0xf]
  %v158 = vld [vmem:[%s3 + $0x2c] sm:$0xf]
  %v159 = vld [vmem:[%s3 + $0x30] sm:$0xf]
  %v160 = vld [vmem:[%s3 + $0x34] sm:$0xf]
  %v161 = vld [vmem:[%s3 + $0x38] sm:$0xf]
  %v162 = vld [vmem:[%s3 + $0x3c] sm:$0xf]
  %v179 = vunpack.c.l.b16 %v147
  %v180 = vunpack.c.l.b16 %v148
  %v181 = vunpack.c.l.b16 %v149
  %v182 = vunpack.c.l.b16 %v150
  %v183 = vunpack.c.l.b16 %v151
  %v184 = vunpack.c.l.b16 %v152
  %v185 = vunpack.c.l.b16 %v153
  %v186 = vunpack.c.l.b16 %v154
  %v187 = vunpack.c.l.b16 %v155
  %v188 = vunpack.c.l.b16 %v156
  %v189 = vunpack.c.l.b16 %v157
  %v190 = vunpack.c.l.b16 %v158
  %v191 = vunpack.c.l.b16 %v159
  %v192 = vunpack.c.l.b16 %v160
  %v193 = vunpack.c.l.b16 %v161
  %v194 = vunpack.c.l.b16 %v162
  %v195 = vpack.c.b16 %v180, %v179
  %v196 = vpack.c.b16 %v182, %v181
  %v197 = vpack.c.b16 %v184, %v183
  %v198 = vpack.c.b16 %v186, %v185
  %v199 = vpack.c.b16 %v188, %v187
  %v200 = vpack.c.b16 %v190, %v189
  %v201 = vpack.c.b16 %v192, %v191
  %v202 = vpack.c.b16 %v194, %v193
  %211 = vmatprep.subr.bf16.mxu0 0
  %212 = vmatpush1.bf16.msra.mxu0 %v202
  %213 = vmatprep.subr.bf16.mxu0 0
  %214 = vmatpush1.bf16.msra.mxu0 %v201
  %215 = vmatprep.subr.bf16.mxu0 0
  %216 = vmatpush1.bf16.msra.mxu0 %v200
  %217 = vmatprep.subr.bf16.mxu0 0
  %218 = vmatpush1.bf16.msra.mxu0 %v199
  %219 = vmatprep.subr.bf16.mxu0 0
  %220 = vmatpush1.bf16.msra.mxu0 %v198
  %221 = vmatprep.subr.bf16.mxu0 0
  %222 = vmatpush1.bf16.msra.mxu0 %v197
  %223 = vmatprep.subr.bf16.mxu0 0
  %224 = vmatpush1.bf16.msra.mxu0 %v196
  %225 = vmatprep.subr.bf16.mxu0 0
  %226 = vmatpush1.bf16.msra.mxu0 %v195
  %227 = vmatprep.subr.bf16.mxu0 0
  %228 = vmatpush2.bf16.msra.mxu0 0
  %229 = vmatprep.subr.bf16.mxu0 0
  %230 = vmatpush2.bf16.msra.mxu0 0
  %231 = vmatprep.subr.bf16.mxu0 0
  %232 = vmatpush2.bf16.msra.mxu0 0
  %233 = vmatprep.subr.bf16.mxu0 0
  %234 = vmatpush2.bf16.msra.mxu0 0
  %235 = vmatprep.subr.bf16.mxu0 0
  %236 = vmatpush2.bf16.msra.mxu0 0
  %237 = vmatprep.subr.bf16.mxu0 0
  %238 = vmatpush2.bf16.msra.mxu0 0
  %239 = vmatprep.subr.bf16.mxu0 0
  %240 = vmatpush2.bf16.msra.mxu0 0
  %241 = vmatprep.subr.bf16.mxu0 0
  %242 = vmatpush2.bf16.msra.mxu0 0
  %243 = vmatprep.mubr.bf16.mxu0 0
  %244 = vmatmul.mubr.bf16.gmra.mxu0 %v146
  %v245 = vpop.f32.mrf.mxu0
  %v246 = vadd.f32 0.0, %v245
  %v247 = vpop.f32.mrf.mxu0
  %v248 = vpop.f32.mrf.mxu0
  %v249 = vadd.f32 0.0, %v248
  %v250 = vpop.f32.mrf.mxu0
  %251 = vdwg.mxu0
  %v252 = vadd.f32 %v144, %v246
  %v253 = vadd.f32 %v145, %v249
  %254 = vst [vmem:[#allocation2] sm:$0xff] %v252
  %255 = vst [vmem:[#allocation2 + $0x8] sm:$0xff] %v253
  // Predicated region
  $region26: #{encoder_forward.25} parent=0 // pred_check
    %p256 = pneg %p21
  $region27: #{encoder_forward.25} parent=0 // pred_check_branch
    %258 = sbr.rel (%p256) target = $region29
  $region28: #{encoder_forward.25} parent=0 // pred_region
    %v259 = vld [vmem:[#allocation2] sm:$0xff]
    %v260 = vld [vmem:[#allocation2 + $0x8] sm:$0xff]
    %v261 = vld [vmem:[%s4] sm:$0x1]
    %v263 = vlaneseq
    %v264 = vshrl.u32 %v263, 7
    %v265 = vsub.s32 0, %v264
    %v266 = vrot.slane %v261, %v265
    %v268 = vadd.f32 %v259, %v266
    %v269 = vadd.f32 %v260, %v266
    %270 = vst [vmem:[%s5] sm:$0xff] %v268
    %271 = vst [vmem:[%s5 + $0x8] sm:$0xff] %v269
  $region29: #{encoder_forward.25} parent=0 // pred_fallthru
    _
  // Predicated region
  $region30: #{encoder_forward.25} parent=0 // pred_check
    _
  $region31: #{encoder_forward.25} parent=0 // pred_check_branch
    %273 = sbr.rel (0) target = $region33
  $region32: #{encoder_forward.25} parent=0 // pred_region
    _
  $region33: #{encoder_forward.25} parent=0 // pred_fallthru
    _
  // Predicated region
  $region34: #{encoder_forward.25} parent=0 // pred_check
    _
  $region35: #{encoder_forward.25} parent=0 // pred_check_branch
    %275 = sbr.rel (0) target = $region37
  $region36: #{encoder_forward.25} parent=0 // pred_region
    _
  $region37: #{encoder_forward.25} parent=0 // pred_fallthru
    _

// kernel: encoder_forward.35
$region0: #{encoder_forward.35}
  #allocation0 [shape = 'u32[]', space=smem, size = 0x4, offset = 0x4, fixed_abs, tag = 'smem constant byte address 0x4 - core index']
  #allocation1 [shape = 'u32[144,128]{1,0:T(1,128)}', space=vmem, size = 0x12000, scoped, tag = 'internal scratch']
  %s0 = inlined_call_operand.vmem [shape: f32[16,32], index: 0, kind: input, shape index: {}]
  %s1 = inlined_call_operand.vmem [shape: f32[1,32], index: 1, kind: input, shape index: {}]
  %s2 = inlined_call_operand.vmem [shape: f32[1,32], index: 2, kind: input, shape index: {}]
  %s3 = inlined_call_operand.hbm [shape: f32[16,32], index: 3, kind: output, shape index: {}]
  %s4 = sld [smem:[#allocation0]]
  $region22: #{encoder_forward.35} parent=0
    _
  %s6 = ssub.s32 1, %s4
  %s7 = scalar_select 0, %s6, %s4
  $region1: #{encoder_forward.35} parent=0
    #allocation2 [shape = 'u8[8192]{0}', space=vmem, size = 0x2000, scoped, tag = 'output window, operand 0, single buffered']
    #allocation3 [shape = 's32[1]{0}', space=sflag, size = 0x4, scoped, tag = 'scoped memory for encoder_forward.35']
    %8 = vsyncpa [#allocation3], 0
    // Predicated region
    $region2: #{encoder_forward.35} parent=1 // pred_check
      _
    $region3: #{encoder_forward.35} parent=1 // pred_check_branch
      %10 = sbr.rel (0) target = $region5
    $region4: #{encoder_forward.35} parent=1 // pred_region
      _
    $region5: #{encoder_forward.35} parent=1 // pred_fallthru
      _
    // Predicated region
    $region6: #{encoder_forward.35} parent=1 // pred_check
      _
    $region7: #{encoder_forward.35} parent=1 // pred_check_branch
      %12 = sbr.rel (0) target = $region9
    $region8: #{encoder_forward.35} parent=1 // pred_region
      _
    $region9: #{encoder_forward.35} parent=1 // pred_fallthru
      _
    // Predicated region
    $region10: #{encoder_forward.35} parent=1 // pred_check
      _
    $region11: #{encoder_forward.35} parent=1 // pred_check_branch
      %14 = sbr.rel (0) target = $region13
    $region12: #{encoder_forward.35} parent=1 // pred_region
      _
    $region13: #{encoder_forward.35} parent=1 // pred_fallthru
      _
    %v15 = vld [vmem:[%s0] sm:$0xff]
    %v16 = vld [vmem:[%s0 + $0x8] sm:$0xff]
    %vm17 = vcmask 261120
    %v18 = vsel %vm17, %v15, 0.0
    %19 = vadd.xlane.f32.xlu0 %v18
    %v20 = vpop.xlane.xlu0 %19
    %v21 = vsel %vm17, %v16, 0.0
    %22 = vadd.xlane.f32.xlu0 %v21
    %v23 = vpop.xlane.xlu0 %22
    %v24 = vrcp.pop 32.0
    %v25 = vmul.f32 %v20, %v24
    %v26 = vmul.f32 %v23, %v24
    %v27 = vsub.f32 %v15, %v25
    %v28 = vsub.f32 %v16, %v26
    %v29 = vmul.f32 %v27, %v27
    %v30 = vmul.f32 %v28, %v28
    %v31 = vsel %vm17, %v29, 0.0
    %32 = vadd.xlane.f32.xlu0 %v31
    %v33 = vpop.xlane.xlu0 %32
    %v34 = vsel %vm17, %v30, 0.0
    %35 = vadd.xlane.f32.xlu0 %v34
    %v36 = vpop.xlane.xlu0 %35
    %v37 = vmul.f32 %v33, %v24
    %v38 = vmul.f32 %v36, %v24
    %v39 = vadd.f32 %v37, 1e-05
    %v40 = vadd.f32 %v38, 1e-05
    %v41 = vrsqrt.pop %v39
    %v42 = vrsqrt.pop %v40
    %v43 = vmul.f32 %v27, %v41
    %v44 = vmul.f32 %v28, %v42
    %v45 = vld [vmem:[%s1] sm:$0x1]
    %v47 = vlaneseq
    %v48 = vshrl.u32 %v47, 7
    %v49 = vsub.s32 0, %v48
    %v50 = vrot.slane %v45, %v49
    %v52 = vmul.f32 %v43, %v50
    %v53 = vmul.f32 %v44, %v50
    %v54 = vld [vmem:[%s2] sm:$0x1]
    %v56 = vlaneseq
    %v57 = vshrl.u32 %v56, 7
    %v58 = vsub.s32 0, %v57
    %v59 = vrot.slane %v54, %v58
    %v61 = vadd.f32 %v52, %v59
    %v62 = vadd.f32 %v53, %v59
    %63 = vst.msk [vmem:[#allocation2] sm:$0xff] %vm17, %v61
    %64 = vst.msk [vmem:[#allocation2 + $0x8] sm:$0xff] %vm17, %v62
    // Predicated region
    $region14: #{encoder_forward.35} parent=1 // pred_check
      _
    $region15: #{encoder_forward.35} parent=1 // pred_check_branch
      %66 = sbr.rel (0) target = $region17
    $region16: #{encoder_forward.35} parent=1 // pred_region
      %s68 = ssub.s32 256, 256
      %69 = vsyncadd [#allocation3], %s68
      %s70 = sshll.u32 [#allocation2], 4
      %s71 = int_to_ptr.vmem [resolvable:$true] %s70
      %76 = dma.vmem_to_hbm [thread:$0]  %s71, 256, %s3, [#allocation3], 128, 128, 8
    $region17: #{encoder_forward.35} parent=1 // pred_fallthru
      _
    // Predicated region
    $region18: #{encoder_forward.35} parent=1 // pred_check
      _
    $region19: #{encoder_forward.35} parent=1 // pred_check_branch
      %78 = sbr.rel (0) target = $region21
    $region20: #{encoder_forward.35} parent=1 // pred_region
      %79 = dma.done [#allocation3], 256
    $region21: #{encoder_forward.35} parent=1 // pred_fallthru
      _
    %80 = vsyncpa [#allocation3], 1

</llo_original>
